<compile_context>
chip_gen: v7x
topology: tpu7x:2x2x1
jax: 0.10.0
libtpu: 0.0.40
codegen_flags: <defaults>
</compile_context>

<pallas_src>
import functools

import jax
import jax.numpy as jnp
from jax import lax
from jax.experimental import pallas as pl
from jax.experimental.pallas import tpu as pltpu


def _round_up(x, m):
    return (x + m - 1) // m * m


def _plr_loss_kernel(lab_q_ref, lab_k_ref, feat_q_ref, feat_k_ref, o_ref,
                     m_sc, l_sc, pnum_sc, pcnt_sc, *,
                     loss_scale, n_real, block_q, block_k):
    qi = pl.program_id(0)
    ki = pl.program_id(1)

    @pl.when(ki == 0)
    def _init():
        m_sc[...] = jnp.full(m_sc.shape, -jnp.inf, jnp.float32)
        l_sc[...] = jnp.zeros(l_sc.shape, jnp.float32)
        pnum_sc[...] = jnp.zeros(pnum_sc.shape, jnp.float32)
        pcnt_sc[...] = jnp.zeros(pcnt_sc.shape, jnp.float32)

    # Gram block on the MXU.  Features were normalized, scaled by
    # sqrt(1/temperature) and cast to bf16 in the wrapper, so `s` is already
    # anchor_dot_contrast / temperature (f32 accumulation).
    s = lax.dot_general(
        feat_q_ref[...], feat_k_ref[...],
        dimension_numbers=(((1,), (1,)), ((), ())),
        preferred_element_type=jnp.float32)                       # [bq, bk] f32

    lq = lab_q_ref[...]                                           # [bq, 1] i32
    lk = lab_k_ref[...]                                           # [1, bk] i32
    same = lq == lk                                               # [bq, bk] bool

    row0 = qi * block_q
    col0 = ki * block_k
    # Full neglect mask only needed if this block touches the diagonal or the
    # padded tail rows/cols; interior blocks take the cheap path.
    has_diag = jnp.logical_and(row0 < col0 + block_k, col0 < row0 + block_q)
    has_pad = jnp.logical_or(row0 + block_q > n_real, col0 + block_k > n_real)
    special = jnp.logical_or(has_diag, has_pad)

    def _accumulate(s_eff, pos, nn_f=None):
        # streaming log-sum-exp + positive statistics
        # TODO(synk): if bundle dumps show the XLU slot binding, fold the two
        # positive reductions into an extra MXU dot against a ones column.
        m_prev = m_sc[...]
        m_new = jnp.maximum(m_prev, jnp.max(s_eff, axis=1, keepdims=True))
        alpha = jnp.exp(m_prev - m_new)
        p = jnp.exp(s_eff - m_new)
        if nn_f is not None:
            p = p * nn_f
        l_sc[...] = alpha * l_sc[...] + jnp.sum(p, axis=1, keepdims=True)
        m_sc[...] = m_new
        pnum_sc[...] += jnp.sum(jnp.where(pos, s_eff, 0.0), axis=1, keepdims=True)
        pcnt_sc[...] += jnp.sum(pos.astype(jnp.float32), axis=1, keepdims=True)

    @pl.when(special)
    def _masked_path():
        row_id = row0 + lax.broadcasted_iota(jnp.int32, (block_q, block_k), 0)
        col_id = col0 + lax.broadcasted_iota(jnp.int32, (block_q, block_k), 1)
        valid = jnp.logical_and(row_id < n_real, col_id < n_real)
        non_neglect = jnp.logical_and(valid, row_id != col_id)
        nn_f = non_neglect.astype(jnp.float32)
        pos = jnp.logical_and(non_neglect, same)
        # zero-fill convention (matches the reference): neglected logits are 0
        # before the row max and excluded from the exp sum.
        _accumulate(s * nn_f, pos, nn_f)

    @pl.when(jnp.logical_not(special))
    def _fast_path():
        _accumulate(s, same)

    @pl.when(ki == pl.num_programs(1) - 1)
    def _finalize():
        # mean_log_prob_pos = sum(pos*logits)/cnt - log(sum exp) = pnum/cnt - m - log(l)
        mlpp = pnum_sc[...] / pcnt_sc[...] - m_sc[...] - jnp.log(l_sc[...])
        row_valid = (qi * block_q + lax.broadcasted_iota(
            jnp.int32, (block_q, 1), 0)) < n_real
        o_ref[...] = jnp.where(row_valid, loss_scale * mlpp, 0.0)


def _vmem_budget_bytes():
    """Generation-aware scoped-VMEM budget (v5e/v6e: 96 MiB, v7x: 48 MiB)."""
    try:
        cap = int(pltpu.get_tpu_info().vmem_capacity_bytes)
    except Exception:
        cap = 64 << 20  # conservative fallback = v7x physical VMEM per TC
    return max(16 << 20, min(cap - (16 << 20), 96 << 20))


def _vmem_footprint(bq, bk, d_pad, feat_bytes):
    feat = 2 * bq * d_pad * feat_bytes + 2 * bk * d_pad * feat_bytes  # dbl-buffered
    labels = 2 * bq * 128 * 4 + 2 * 8 * max(bk, 128) * 4             # lane-padded
    out = 2 * bq * 128 * 4
    scratch = 4 * bq * 128 * 4
    temps = 8 * bq * bk * 4        # s, p, masks, iotas, ... (generous)
    return feat + labels + out + scratch + temps


def _pick_tiles(n128, d_pad, feat_bytes, budget):
    """Largest (block_q, block_k) that divides n128, fits the VMEM budget.

    block_q is grown first (cuts key-stream re-DMA linearly); block_k is capped
    at 512 to bound the quadratic [bq, bk] temporaries.  Keep >= 2 query blocks
    when possible so the 'parallel' q axis can shard across v7x TensorCores.
    """
    cands = [1024, 768, 512, 384, 256, 128]
    q_cap = n128 if n128 <= 128 else max(128, n128 // 2)
    for bq in cands:
        if bq > q_cap or n128 % bq:
            continue
        for bk in cands:
            if bk > min(bq, 512) or bq % bk or n128 % bk:
                continue
            if _vmem_footprint(bq, bk, d_pad, feat_bytes) <= budget:
                return bq, bk
    return 128, 128


def plr_loss(features, labels=None, mask=None, *, temperature=1.0,
             base_temperature=1.0, flat=False, matmul_dtype=jnp.bfloat16):
    """JAX / Pallas implementation of PLRLoss.forward (flat=False path)."""
    if flat:
        # TODO(synk): flat=True needs torch.nonzero-style data-dependent row
        # selection (dynamic shapes); not implemented.
        raise NotImplementedError("flat=True path not implemented")
    if labels is not None and mask is not None:
        raise ValueError("Cannot define both `labels` and `mask`")
    if mask is not None:
        # TODO(synk): arbitrary asymmetric user mask (bsz x bsz with 0 entries)
        # cannot be rebuilt from labels in-kernel; not implemented.
        raise NotImplementedError("explicit `mask` path not implemented")

    if features.ndim < 3:
        raise ValueError("`features` needs to be [bsz, n_views, ...]")
    if features.ndim > 3:
        features = features.reshape(features.shape[0], features.shape[1], -1)
    bsz, n_views, dim = features.shape

    if labels is None:
        # SimCLR default: mask = eye(bsz) (0 -> -1)  ==  per-sample labels.
        labels = jnp.arange(bsz, dtype=jnp.int32)
    else:
        labels = labels.reshape(-1)
        if labels.shape[0] != bsz:
            raise ValueError("Num of labels does not match num of features")
        labels = labels.astype(jnp.int32)

    n_total = bsz * n_views

    # --- one-shot prep (hoisted out of the kernel): F.normalize(dim=-1),
    # fold sqrt(1/temperature) into the shared anchor/contrast features, bf16.
    feat = features.astype(jnp.float32)
    norm = jnp.sqrt(jnp.sum(feat * feat, axis=-1, keepdims=True))
    feat = feat / jnp.maximum(norm, 1e-12)
    feat = feat * ((1.0 / float(temperature)) ** 0.5)
    # view-major row order == torch.cat(torch.unbind(features, dim=1), dim=0)
    anchor = jnp.transpose(feat, (1, 0, 2)).reshape(n_total, dim)
    anchor = anchor.astype(matmul_dtype)
    row_labels = jnp.tile(labels, (n_views,))                      # [N]

    # --- TPU-friendly padding / generation-aware tiling.
    d_pad = _round_up(dim, 128)
    n_pad = _round_up(n_total, 128)
    budget = _vmem_budget_bytes()
    feat_bytes = jnp.dtype(matmul_dtype).itemsize
    bq, bk = _pick_tiles(n_pad, d_pad, feat_bytes, int(budget * 0.8))

    feat_p = jnp.pad(anchor, ((0, n_pad - n_total), (0, d_pad - dim)))
    lab = jnp.pad(row_labels, (0, n_pad - n_total), constant_values=-1)
    lab_q = lab.reshape(n_pad, 1)
    lab_k = lab.reshape(1, n_pad)

    kernel = functools.partial(
        _plr_loss_kernel,
        loss_scale=-(float(temperature) / float(base_temperature)),
        n_real=n_total, block_q=bq, block_k=bk)

    grid_spec = pltpu.PrefetchScalarGridSpec(
        num_scalar_prefetch=0,
        grid=(n_pad // bq, n_pad // bk),
        in_specs=[
            pl.BlockSpec((bq, 1), lambda qi, ki: (qi, 0)),         # row labels
            pl.BlockSpec((1, bk), lambda qi, ki: (0, ki)),         # col labels
            pl.BlockSpec((bq, d_pad), lambda qi, ki: (qi, 0)),     # query feats
            # TODO(synk): add pipeline_mode=pl.Buffered(3) here if v5e profiling
            # shows exposed DMA on the key stream.
            pl.BlockSpec((bk, d_pad), lambda qi, ki: (ki, 0)),     # key feats
        ],
        out_specs=pl.BlockSpec((bq, 1), lambda qi, ki: (qi, 0)),
        scratch_shapes=[pltpu.VMEM((bq, 1), jnp.float32)] * 4,
    )
    per_row = pl.pallas_call(
        kernel,
        out_shape=jax.ShapeDtypeStruct((n_pad, 1), jnp.float32),
        grid_spec=grid_spec,
        compiler_params=pltpu.CompilerParams(
            dimension_semantics=("parallel", "arbitrary"),
            vmem_limit_bytes=int(budget)),
    )(lab_q, lab_k, feat_p, feat_p)

    return jnp.sum(per_row) / n_total


def _plr_loss_ref(features, labels, *, temperature=1.0, base_temperature=1.0):
    """Pure-JAX reference mirroring the PyTorch forward (flat=False)."""
    if features.ndim > 3:
        features = features.reshape(features.shape[0], features.shape[1], -1)
    bsz, n_views, dim = features.shape
    labels = labels.reshape(-1, 1)
    m = (labels == labels.T).astype(jnp.float32)
    m = jnp.where(m == 0, -1.0, m)
    n_total = bsz * n_views
    m = jnp.tile(m, (n_views, n_views))
    m = m * (1.0 - jnp.eye(n_total, dtype=jnp.float32))

    feat = features.astype(jnp.float32)
    feat = feat / jnp.maximum(
        jnp.linalg.norm(feat, axis=-1, keepdims=True), 1e-12)
    anchor = jnp.transpose(feat, (1, 0, 2)).reshape(n_total, dim)
    adc = anchor @ anchor.T

    positive_mask = (m == 1.0).astype(jnp.float32)
    neglect_mask = (m == 0.0).astype(jnp.float32)
    non_neglect = 1.0 - neglect_mask
    adc = adc * non_neglect / temperature
    logits = adc - jnp.max(adc, axis=1, keepdims=True)
    exp_logits = jnp.exp(logits) * non_neglect
    log_prob = logits - jnp.log(jnp.sum(exp_logits, axis=1, keepdims=True))
    mean_log_prob_pos = (positive_mask * log_prob).sum(1) / positive_mask.sum(1)
    return jnp.mean(-(temperature / base_temperature) * mean_log_prob_pos)


if __name__ == "__main__":
    key = jax.random.PRNGKey(0)
    k_feat, k_lab, k_feat2, k_lab2 = jax.random.split(key, 4)

    # --- small supervised (labels) case: single block, diagonal + padding path.
    bsz, n_views, dim = 8, 2, 32
    features = jax.random.normal(k_feat, (bsz, n_views, dim), dtype=jnp.float32)
    labels = jax.random.randint(k_lab, (bsz,), 0, 3)           # repeated classes
    loss = jax.block_until_ready(
        plr_loss(features, labels=labels, temperature=1.0, base_temperature=1.0))
    ref = _plr_loss_ref(features, labels)
    assert jnp.allclose(loss, ref, rtol=2e-2, atol=2e-2), (loss, ref)

    # --- unsupervised (SimCLR) default path == labels = arange(bsz).
    loss_u = jax.block_until_ready(plr_loss(features))
    ref_u = _plr_loss_ref(features, jnp.arange(bsz))
    assert jnp.allclose(loss_u, ref_u, rtol=2e-2, atol=2e-2), (loss_u, ref_u)

    # --- multi-block case: exercises interior fast path + diagonal blocks.
    bsz2, n_views2, dim2 = 192, 2, 48        # N = 384 -> 3x3 grid of 128 tiles
    features2 = jax.random.normal(k_feat2, (bsz2, n_views2, dim2), jnp.float32)
    labels2 = jax.random.randint(k_lab2, (bsz2,), 0, 6)
    loss2 = jax.block_until_ready(
        plr_loss(features2, labels=labels2, temperature=0.5))
    ref2 = _plr_loss_ref(features2, labels2, temperature=0.5)
    assert jnp.allclose(loss2, ref2, rtol=2e-2, atol=2e-2), (loss2, ref2)

    print("KERNEL_OK")
</pallas_src>

<mosaic_0001>
module attributes {stable_mosaic.version = 11 : i64} {
  func.func @_plr_loss_kernel(%arg0: i32, %arg1: i32, %arg2: memref<128x1xi32, #tpu.memory_space<vmem>>, %arg3: memref<1x128xi32, #tpu.memory_space<vmem>>, %arg4: memref<128x128xbf16, #tpu.memory_space<vmem>>, %arg5: memref<128x128xbf16, #tpu.memory_space<vmem>>, %arg6: memref<128x1xf32, #tpu.memory_space<vmem>>, %arg7: memref<128x1xf32, #tpu.memory_space<vmem>>, %arg8: memref<128x1xf32, #tpu.memory_space<vmem>>, %arg9: memref<128x1xf32, #tpu.memory_space<vmem>>, %arg10: memref<128x1xf32, #tpu.memory_space<vmem>>) attributes {dimension_semantics = [#tpu.dimension_semantics<parallel>, #tpu.dimension_semantics<arbitrary>], iteration_bounds = array<i64: 1, 1>, scalar_prefetch = 0 : i64, scratch_operands = 4 : i64, tpu.core_type = #tpu.core_type<tc>, window_params = [{transform_indices = @transform_0, window_bounds = array<i64: 128, 1>}, {transform_indices = @transform_1, window_bounds = array<i64: 1, 128>}, {transform_indices = @transform_2, window_bounds = array<i64: 128, 128>}, {transform_indices = @transform_3, window_bounds = array<i64: 128, 128>}, {transform_indices = @transform_4, window_bounds = array<i64: 128, 1>}]} {
    %c0_i32 = arith.constant 0 : i32
    %0 = arith.cmpi eq, %arg1, %c0_i32 : i32
    %1 = arith.extui %0 : i1 to i32
    %c0_i32_0 = arith.constant 0 : i32
    %2 = arith.cmpi ne, %1, %c0_i32_0 : i32
    scf.if %2 {
      %cst_18 = arith.constant 0xFF800000 : f32
      %32 = vector.broadcast %cst_18 : f32 to vector<128x1xf32>
      %c0_19 = arith.constant 0 : index
      %c0_20 = arith.constant 0 : index
      %33 = vector.load %arg7[%c0_19, %c0_20] : memref<128x1xf32, #tpu.memory_space<vmem>>, vector<128x1xf32>
      tpu.vector_store %arg7[%c0_19, %c0_20], %32 {strides = array<i32>} : memref<128x1xf32, #tpu.memory_space<vmem>>, vector<128x1xf32>,
      %cst_21 = arith.constant 0.000000e+00 : f32
      %34 = vector.broadcast %cst_21 : f32 to vector<128x1xf32>
      %c0_22 = arith.constant 0 : index
      %c0_23 = arith.constant 0 : index
      %35 = vector.load %arg8[%c0_22, %c0_23] : memref<128x1xf32, #tpu.memory_space<vmem>>, vector<128x1xf32>
      tpu.vector_store %arg8[%c0_22, %c0_23], %34 {strides = array<i32>} : memref<128x1xf32, #tpu.memory_space<vmem>>, vector<128x1xf32>,
      %cst_24 = arith.constant 0.000000e+00 : f32
      %36 = vector.broadcast %cst_24 : f32 to vector<128x1xf32>
      %c0_25 = arith.constant 0 : index
      %c0_26 = arith.constant 0 : index
      %37 = vector.load %arg9[%c0_25, %c0_26] : memref<128x1xf32, #tpu.memory_space<vmem>>, vector<128x1xf32>
      tpu.vector_store %arg9[%c0_25, %c0_26], %36 {strides = array<i32>} : memref<128x1xf32, #tpu.memory_space<vmem>>, vector<128x1xf32>,
      %cst_27 = arith.constant 0.000000e+00 : f32
      %38 = vector.broadcast %cst_27 : f32 to vector<128x1xf32>
      %c0_28 = arith.constant 0 : index
      %c0_29 = arith.constant 0 : index
      %39 = vector.load %arg10[%c0_28, %c0_29] : memref<128x1xf32, #tpu.memory_space<vmem>>, vector<128x1xf32>
      tpu.vector_store %arg10[%c0_28, %c0_29], %38 {strides = array<i32>} : memref<128x1xf32, #tpu.memory_space<vmem>>, vector<128x1xf32>,
    } else {
    }
    %c0 = arith.constant 0 : index
    %c0_1 = arith.constant 0 : index
    %3 = vector.load %arg4[%c0, %c0_1] : memref<128x128xbf16, #tpu.memory_space<vmem>>, vector<128x128xbf16>
    %c0_2 = arith.constant 0 : index
    %c0_3 = arith.constant 0 : index
    %4 = vector.load %arg5[%c0_2, %c0_3] : memref<128x128xbf16, #tpu.memory_space<vmem>>, vector<128x128xbf16>
    %cst = arith.constant dense<0.000000e+00> : vector<128x128xf32>
    %5 = tpu.matmul %3, %4, %cst {dimension_numbers = #tpu.dot_dimension_numbers<[1], [1], [0], [0], [0, 0, 1, 0], [], []>} : vector<128x128xbf16>, vector<128x128xbf16>, vector<128x128xf32> -> vector<128x128xf32>
    %c0_4 = arith.constant 0 : index
    %c0_5 = arith.constant 0 : index
    %6 = vector.load %arg2[%c0_4, %c0_5] : memref<128x1xi32, #tpu.memory_space<vmem>>, vector<128x1xi32>
    %c0_6 = arith.constant 0 : index
    %c0_7 = arith.constant 0 : index
    %7 = vector.load %arg3[%c0_6, %c0_7] : memref<1x128xi32, #tpu.memory_space<vmem>>, vector<1x128xi32>
    %8 = vector.broadcast %6 : vector<128x1xi32> to vector<128x128xi32>
    %9 = vector.broadcast %7 : vector<1x128xi32> to vector<128x128xi32>
    %10 = arith.cmpi eq, %8, %9 : vector<128x128xi32>
    %c128_i32 = arith.constant 128 : i32
    %11 = arith.muli %arg0, %c128_i32 : i32
    %c128_i32_8 = arith.constant 128 : i32
    %12 = arith.muli %arg1, %c128_i32_8 : i32
    %c128_i32_9 = arith.constant 128 : i32
    %13 = arith.addi %12, %c128_i32_9 : i32
    %14 = arith.cmpi slt, %11, %13 : i32
    %c128_i32_10 = arith.constant 128 : i32
    %15 = arith.addi %11, %c128_i32_10 : i32
    %16 = arith.cmpi slt, %12, %15 : i32
    %17 = arith.andi %14, %16 : i1
    %c128_i32_11 = arith.constant 128 : i32
    %18 = arith.addi %11, %c128_i32_11 : i32
    %c16_i32 = arith.constant 16 : i32
    %19 = arith.cmpi sgt, %18, %c16_i32 : i32
    %c128_i32_12 = arith.constant 128 : i32
    %20 = arith.addi %12, %c128_i32_12 : i32
    %c16_i32_13 = arith.constant 16 : i32
    %21 = arith.cmpi sgt, %20, %c16_i32_13 : i32
    %22 = arith.ori %19, %21 : i1
    %23 = arith.ori %17, %22 : i1
    %24 = arith.extui %23 : i1 to i32
    %c0_i32_14 = arith.constant 0 : i32
    %25 = arith.cmpi ne, %24, %c0_i32_14 : i32
    scf.if %25 {
      %32 = tpu.iota {dimensions = array<i32: 0>} : vector<128x128xi32>
      %33 = vector.broadcast %11 : i32 to vector<128x128xi32>
      %34 = arith.addi %33, %32 : vector<128x128xi32>
      %35 = tpu.iota {dimensions = array<i32: 1>} : vector<128x128xi32>
      %36 = vector.broadcast %12 : i32 to vector<128x128xi32>
      %37 = arith.addi %36, %35 : vector<128x128xi32>
      %c16_i32_18 = arith.constant 16 : i32
      %38 = vector.broadcast %c16_i32_18 : i32 to vector<128x128xi32>
      %39 = arith.cmpi slt, %34, %38 : vector<128x128xi32>
      %c16_i32_19 = arith.constant 16 : i32
      %40 = vector.broadcast %c16_i32_19 : i32 to vector<128x128xi32>
      %41 = arith.cmpi slt, %37, %40 : vector<128x128xi32>
      %42 = arith.andi %39, %41 : vector<128x128xi1>
      %43 = arith.cmpi ne, %34, %37 : vector<128x128xi32>
      %44 = arith.andi %42, %43 : vector<128x128xi1>
      %45 = arith.extui %44 : vector<128x128xi1> to vector<128x128xi32>
      %46 = arith.sitofp %45 : vector<128x128xi32> to vector<128x128xf32>
      %47 = arith.andi %44, %10 : vector<128x128xi1>
      %48 = arith.mulf %5, %46 : vector<128x128xf32>
      %c0_20 = arith.constant 0 : index
      %c0_21 = arith.constant 0 : index
      %49 = vector.load %arg7[%c0_20, %c0_21] : memref<128x1xf32, #tpu.memory_space<vmem>>, vector<128x1xf32>
      %cst_22 = arith.constant dense<0xFF800000> : vector<128xf32>
      %50 = vector.multi_reduction <maximumf>, %48, %cst_22 [1] : vector<128x128xf32> to vector<128xf32>
      %51 = vector.shape_cast %50 : vector<128xf32> to vector<128x1xf32>
      %52 = arith.maximumf %49, %51 : vector<128x1xf32>
      %53 = arith.subf %49, %52 : vector<128x1xf32>
      %54 = math.exp %53 : vector<128x1xf32>
      %55 = vector.broadcast %52 : vector<128x1xf32> to vector<128x128xf32>
      %56 = arith.subf %48, %55 : vector<128x128xf32>
      %57 = math.exp %56 : vector<128x128xf32>
      %58 = arith.mulf %57, %46 : vector<128x128xf32>
      %c0_23 = arith.constant 0 : index
      %c0_24 = arith.constant 0 : index
      %59 = vector.load %arg8[%c0_23, %c0_24] : memref<128x1xf32, #tpu.memory_space<vmem>>, vector<128x1xf32>
      %60 = arith.mulf %54, %59 : vector<128x1xf32>
      %cst_25 = arith.constant dense<0.000000e+00> : vector<128xf32>
      %61 = vector.multi_reduction <add>, %58, %cst_25 [1] : vector<128x128xf32> to vector<128xf32>
      %62 = vector.shape_cast %61 : vector<128xf32> to vector<128x1xf32>
      %63 = arith.addf %60, %62 : vector<128x1xf32>
      %c0_26 = arith.constant 0 : index
      %c0_27 = arith.constant 0 : index
      %64 = vector.load %arg8[%c0_26, %c0_27] : memref<128x1xf32, #tpu.memory_space<vmem>>, vector<128x1xf32>
      tpu.vector_store %arg8[%c0_26, %c0_27], %63 {strides = array<i32>} : memref<128x1xf32, #tpu.memory_space<vmem>>, vector<128x1xf32>,
      %c0_28 = arith.constant 0 : index
      %c0_29 = arith.constant 0 : index
      %65 = vector.load %arg7[%c0_28, %c0_29] : memref<128x1xf32, #tpu.memory_space<vmem>>, vector<128x1xf32>
      tpu.vector_store %arg7[%c0_28, %c0_29], %52 {strides = array<i32>} : memref<128x1xf32, #tpu.memory_space<vmem>>, vector<128x1xf32>,
      %c0_30 = arith.constant 0 : index
      %c0_31 = arith.constant 0 : index
      %66 = vector.load %arg9[%c0_30, %c0_31] : memref<128x1xf32, #tpu.memory_space<vmem>>, vector<128x1xf32>
      %cst_32 = arith.constant 0.000000e+00 : f32
      %67 = vector.broadcast %cst_32 : f32 to vector<128x128xf32>
      %68 = arith.select %47, %48, %67 : vector<128x128xi1>, vector<128x128xf32>
      %cst_33 = arith.constant dense<0.000000e+00> : vector<128xf32>
      %69 = vector.multi_reduction <add>, %68, %cst_33 [1] : vector<128x128xf32> to vector<128xf32>
      %70 = vector.shape_cast %69 : vector<128xf32> to vector<128x1xf32>
      %71 = arith.addf %66, %70 : vector<128x1xf32>
      %c0_34 = arith.constant 0 : index
      %c0_35 = arith.constant 0 : index
      %72 = vector.load %arg9[%c0_34, %c0_35] : memref<128x1xf32, #tpu.memory_space<vmem>>, vector<128x1xf32>
      tpu.vector_store %arg9[%c0_34, %c0_35], %71 {strides = array<i32>} : memref<128x1xf32, #tpu.memory_space<vmem>>, vector<128x1xf32>,
      %c0_36 = arith.constant 0 : index
      %c0_37 = arith.constant 0 : index
      %73 = vector.load %arg10[%c0_36, %c0_37] : memref<128x1xf32, #tpu.memory_space<vmem>>, vector<128x1xf32>
      %74 = arith.extui %47 : vector<128x128xi1> to vector<128x128xi32>
      %75 = arith.sitofp %74 : vector<128x128xi32> to vector<128x128xf32>
      %cst_38 = arith.constant dense<0.000000e+00> : vector<128xf32>
      %76 = vector.multi_reduction <add>, %75, %cst_38 [1] : vector<128x128xf32> to vector<128xf32>
      %77 = vector.shape_cast %76 : vector<128xf32> to vector<128x1xf32>
      %78 = arith.addf %73, %77 : vector<128x1xf32>
      %c0_39 = arith.constant 0 : index
      %c0_40 = arith.constant 0 : index
      %79 = vector.load %arg10[%c0_39, %c0_40] : memref<128x1xf32, #tpu.memory_space<vmem>>, vector<128x1xf32>
      tpu.vector_store %arg10[%c0_39, %c0_40], %78 {strides = array<i32>} : memref<128x1xf32, #tpu.memory_space<vmem>>, vector<128x1xf32>,
    } else {
    }
    %true = arith.constant true
    %26 = arith.xori %23, %true : i1
    %27 = arith.extui %26 : i1 to i32
    %c0_i32_15 = arith.constant 0 : i32
    %28 = arith.cmpi ne, %27, %c0_i32_15 : i32
    scf.if %28 {
      %c0_18 = arith.constant 0 : index
      %c0_19 = arith.constant 0 : index
      %32 = vector.load %arg7[%c0_18, %c0_19] : memref<128x1xf32, #tpu.memory_space<vmem>>, vector<128x1xf32>
      %cst_20 = arith.constant dense<0xFF800000> : vector<128xf32>
      %33 = vector.multi_reduction <maximumf>, %5, %cst_20 [1] : vector<128x128xf32> to vector<128xf32>
      %34 = vector.shape_cast %33 : vector<128xf32> to vector<128x1xf32>
      %35 = arith.maximumf %32, %34 : vector<128x1xf32>
      %36 = arith.subf %32, %35 : vector<128x1xf32>
      %37 = math.exp %36 : vector<128x1xf32>
      %38 = vector.broadcast %35 : vector<128x1xf32> to vector<128x128xf32>
      %39 = arith.subf %5, %38 : vector<128x128xf32>
      %40 = math.exp %39 : vector<128x128xf32>
      %c0_21 = arith.constant 0 : index
      %c0_22 = arith.constant 0 : index
      %41 = vector.load %arg8[%c0_21, %c0_22] : memref<128x1xf32, #tpu.memory_space<vmem>>, vector<128x1xf32>
      %42 = arith.mulf %37, %41 : vector<128x1xf32>
      %cst_23 = arith.constant dense<0.000000e+00> : vector<128xf32>
      %43 = vector.multi_reduction <add>, %40, %cst_23 [1] : vector<128x128xf32> to vector<128xf32>
      %44 = vector.shape_cast %43 : vector<128xf32> to vector<128x1xf32>
      %45 = arith.addf %42, %44 : vector<128x1xf32>
      %c0_24 = arith.constant 0 : index
      %c0_25 = arith.constant 0 : index
      %46 = vector.load %arg8[%c0_24, %c0_25] : memref<128x1xf32, #tpu.memory_space<vmem>>, vector<128x1xf32>
      tpu.vector_store %arg8[%c0_24, %c0_25], %45 {strides = array<i32>} : memref<128x1xf32, #tpu.memory_space<vmem>>, vector<128x1xf32>,
      %c0_26 = arith.constant 0 : index
      %c0_27 = arith.constant 0 : index
      %47 = vector.load %arg7[%c0_26, %c0_27] : memref<128x1xf32, #tpu.memory_space<vmem>>, vector<128x1xf32>
      tpu.vector_store %arg7[%c0_26, %c0_27], %35 {strides = array<i32>} : memref<128x1xf32, #tpu.memory_space<vmem>>, vector<128x1xf32>,
      %c0_28 = arith.constant 0 : index
      %c0_29 = arith.constant 0 : index
      %48 = vector.load %arg9[%c0_28, %c0_29] : memref<128x1xf32, #tpu.memory_space<vmem>>, vector<128x1xf32>
      %cst_30 = arith.constant 0.000000e+00 : f32
      %49 = vector.broadcast %cst_30 : f32 to vector<128x128xf32>
      %50 = arith.select %10, %5, %49 : vector<128x128xi1>, vector<128x128xf32>
      %cst_31 = arith.constant dense<0.000000e+00> : vector<128xf32>
      %51 = vector.multi_reduction <add>, %50, %cst_31 [1] : vector<128x128xf32> to vector<128xf32>
      %52 = vector.shape_cast %51 : vector<128xf32> to vector<128x1xf32>
      %53 = arith.addf %48, %52 : vector<128x1xf32>
      %c0_32 = arith.constant 0 : index
      %c0_33 = arith.constant 0 : index
      %54 = vector.load %arg9[%c0_32, %c0_33] : memref<128x1xf32, #tpu.memory_space<vmem>>, vector<128x1xf32>
      tpu.vector_store %arg9[%c0_32, %c0_33], %53 {strides = array<i32>} : memref<128x1xf32, #tpu.memory_space<vmem>>, vector<128x1xf32>,
      %c0_34 = arith.constant 0 : index
      %c0_35 = arith.constant 0 : index
      %55 = vector.load %arg10[%c0_34, %c0_35] : memref<128x1xf32, #tpu.memory_space<vmem>>, vector<128x1xf32>
      %56 = arith.extui %10 : vector<128x128xi1> to vector<128x128xi32>
      %57 = arith.sitofp %56 : vector<128x128xi32> to vector<128x128xf32>
      %cst_36 = arith.constant dense<0.000000e+00> : vector<128xf32>
      %58 = vector.multi_reduction <add>, %57, %cst_36 [1] : vector<128x128xf32> to vector<128xf32>
      %59 = vector.shape_cast %58 : vector<128xf32> to vector<128x1xf32>
      %60 = arith.addf %55, %59 : vector<128x1xf32>
      %c0_37 = arith.constant 0 : index
      %c0_38 = arith.constant 0 : index
      %61 = vector.load %arg10[%c0_37, %c0_38] : memref<128x1xf32, #tpu.memory_space<vmem>>, vector<128x1xf32>
      tpu.vector_store %arg10[%c0_37, %c0_38], %60 {strides = array<i32>} : memref<128x1xf32, #tpu.memory_space<vmem>>, vector<128x1xf32>,
    } else {
    }
    %c0_i32_16 = arith.constant 0 : i32
    %29 = arith.cmpi eq, %arg1, %c0_i32_16 : i32
    %30 = arith.extui %29 : i1 to i32
    %c0_i32_17 = arith.constant 0 : i32
    %31 = arith.cmpi ne, %30, %c0_i32_17 : i32
    scf.if %31 {
      %c0_18 = arith.constant 0 : index
      %c0_19 = arith.constant 0 : index
      %32 = vector.load %arg9[%c0_18, %c0_19] : memref<128x1xf32, #tpu.memory_space<vmem>>, vector<128x1xf32>
      %c0_20 = arith.constant 0 : index
      %c0_21 = arith.constant 0 : index
      %33 = vector.load %arg10[%c0_20, %c0_21] : memref<128x1xf32, #tpu.memory_space<vmem>>, vector<128x1xf32>
      %34 = arith.divf %32, %33 : vector<128x1xf32>
      %c0_22 = arith.constant 0 : index
      %c0_23 = arith.constant 0 : index
      %35 = vector.load %arg7[%c0_22, %c0_23] : memref<128x1xf32, #tpu.memory_space<vmem>>, vector<128x1xf32>
      %36 = arith.subf %34, %35 : vector<128x1xf32>
      %c0_24 = arith.constant 0 : index
      %c0_25 = arith.constant 0 : index
      %37 = vector.load %arg8[%c0_24, %c0_25] : memref<128x1xf32, #tpu.memory_space<vmem>>, vector<128x1xf32>
      %38 = math.log %37 : vector<128x1xf32>
      %39 = arith.subf %36, %38 : vector<128x1xf32>
      %c128_i32_26 = arith.constant 128 : i32
      %40 = arith.muli %arg0, %c128_i32_26 : i32
      %41 = tpu.iota {dimensions = array<i32: 0>} : vector<128x1xi32>
      %42 = vector.broadcast %40 : i32 to vector<128x1xi32>
      %43 = arith.addi %42, %41 : vector<128x1xi32>
      %c16_i32_27 = arith.constant 16 : i32
      %44 = vector.broadcast %c16_i32_27 : i32 to vector<128x1xi32>
      %45 = arith.cmpi slt, %43, %44 : vector<128x1xi32>
      %cst_28 = arith.constant -1.000000e+00 : f32
      %46 = vector.broadcast %cst_28 : f32 to vector<128x1xf32>
      %47 = arith.mulf %46, %39 : vector<128x1xf32>
      %cst_29 = arith.constant 0.000000e+00 : f32
      %48 = vector.broadcast %cst_29 : f32 to vector<128x1xf32>
      %49 = arith.select %45, %47, %48 : vector<128x1xi1>, vector<128x1xf32>
      %c0_30 = arith.constant 0 : index
      %c0_31 = arith.constant 0 : index
      %50 = vector.load %arg6[%c0_30, %c0_31] : memref<128x1xf32, #tpu.memory_space<vmem>>, vector<128x1xf32>
      tpu.vector_store %arg6[%c0_30, %c0_31], %49 {strides = array<i32>} : memref<128x1xf32, #tpu.memory_space<vmem>>, vector<128x1xf32>,
    } else {
    }
    return
  }
  func.func @transform_0(%arg0: i32, %arg1: i32) -> (i32, i32) {
    %c0_i32 = arith.constant 0 : i32
    %c0_i32_0 = arith.constant 0 : i32
    return %arg0, %c0_i32 : i32, i32
  }
  func.func @transform_1(%arg0: i32, %arg1: i32) -> (i32, i32) {
    %c0_i32 = arith.constant 0 : i32
    %c0_i32_0 = arith.constant 0 : i32
    return %c0_i32, %arg1 : i32, i32
  }
  func.func @transform_2(%arg0: i32, %arg1: i32) -> (i32, i32) {
    %c0_i32 = arith.constant 0 : i32
    %c0_i32_0 = arith.constant 0 : i32
    return %arg0, %c0_i32 : i32, i32
  }
  func.func @transform_3(%arg0: i32, %arg1: i32) -> (i32, i32) {
    %c0_i32 = arith.constant 0 : i32
    %c0_i32_0 = arith.constant 0 : i32
    return %arg1, %c0_i32 : i32, i32
  }
  func.func @transform_4(%arg0: i32, %arg1: i32) -> (i32, i32) {
    %c0_i32 = arith.constant 0 : i32
    %c0_i32_0 = arith.constant 0 : i32
    return %arg0, %c0_i32 : i32, i32
  }
}

</mosaic_0001>

<llo_original>
// kernel: tpu_custom_call.1
$region0: #{tpu_custom_call.1}
  #allocation0 [shape = 'u32[]', space=smem, size = 0x4, offset = 0x4, fixed_abs, tag = 'smem constant byte address 0x4 - core index']
  #allocation1 [shape = 'u32[144,128]{1,0:T(1,128)}', space=vmem, size = 0x12000, scoped, tag = 'internal scratch']
  #allocation2 [shape = 'f32[128,1]{1,0:T(8,128)}', space=vmem, size = 0x10000, scoped, tag = 'scratch operand']
  #allocation3 [shape = 'f32[128,1]{1,0:T(8,128)}', space=vmem, size = 0x10000, scoped, tag = 'scratch operand']
  #allocation4 [shape = 'f32[128,1]{1,0:T(8,128)}', space=vmem, size = 0x10000, scoped, tag = 'scratch operand']
  #allocation5 [shape = 'f32[128,1]{1,0:T(8,128)}', space=vmem, size = 0x10000, scoped, tag = 'scratch operand']
  %s0 = inlined_call_operand.vmem [shape: s32[128,1], index: 0, kind: input, shape index: {}]
  %s1 = inlined_call_operand.vmem [shape: s32[1,128], index: 1, kind: input, shape index: {}]
  %s2 = inlined_call_operand.vmem [shape: bf16[128,128], index: 2, kind: input, shape index: {}]
  %s3 = inlined_call_operand.vmem [shape: bf16[128,128], index: 3, kind: input, shape index: {}]
  %s4 = inlined_call_operand.vmem [shape: f32[128,1], index: 4, kind: output, shape index: {}]
  %s5 = sld [smem:[#allocation0]]
  $region42: #{tpu_custom_call.1} parent=0
    _
  %s7 = ssub.s32 1, %s5
  %s8 = scalar_select 0, %s7, %s5
  // Predicated region
  $region2: #{tpu_custom_call.1} parent=0 // pred_check
    _
  $region3: #{tpu_custom_call.1} parent=0 // pred_check_branch
    %10 = sbr.rel (0) target = $region5
  $region4: #{tpu_custom_call.1} parent=0 // pred_region
    _
  $region5: #{tpu_custom_call.1} parent=0 // pred_fallthru
    _
  // Predicated region
  $region6: #{tpu_custom_call.1} parent=0 // pred_check
    _
  $region7: #{tpu_custom_call.1} parent=0 // pred_check_branch
    %12 = sbr.rel (0) target = $region9
  $region8: #{tpu_custom_call.1} parent=0 // pred_region
    _
  $region9: #{tpu_custom_call.1} parent=0 // pred_fallthru
    _
  // Predicated region
  $region10: #{tpu_custom_call.1} parent=0 // pred_check
    _
  $region11: #{tpu_custom_call.1} parent=0 // pred_check_branch
    %14 = sbr.rel (0) target = $region13
  $region12: #{tpu_custom_call.1} parent=0 // pred_region
    _
  $region13: #{tpu_custom_call.1} parent=0 // pred_fallthru
    _
  // Predicated region
  $region14: #{tpu_custom_call.1} parent=0 // pred_check
    _
  $region15: #{tpu_custom_call.1} parent=0 // pred_check_branch
    %16 = sbr.rel (0) target = $region17
  $region16: #{tpu_custom_call.1} parent=0 // pred_region
    _
  $region17: #{tpu_custom_call.1} parent=0 // pred_fallthru
    _
  %p18 = scmp.eq.s32.totalorder 0, 0
  // Predicated region
  $region18: #{tpu_custom_call.1} parent=0 // pred_check
    %p19 = pneg %p18
  $region19: #{tpu_custom_call.1} parent=0 // pred_check_branch
    %21 = sbr.rel (%p19) target = $region21
  $region20: #{tpu_custom_call.1} parent=0 // pred_region
    %vm22 = vcmask 7168
    %23 = vst.msk [vmem:[#allocation2] sm:$0xff] %vm22, -inf
    %24 = vst.msk [vmem:[#allocation2 + $0x8] sm:$0xff] %vm22, -inf
    %25 = vst.msk [vmem:[#allocation2 + $0x10] sm:$0xff] %vm22, -inf
    %26 = vst.msk [vmem:[#allocation2 + $0x18] sm:$0xff] %vm22, -inf
    %27 = vst.msk [vmem:[#allocation2 + $0x20] sm:$0xff] %vm22, -inf
    %28 = vst.msk [vmem:[#allocation2 + $0x28] sm:$0xff] %vm22, -inf
    %29 = vst.msk [vmem:[#allocation2 + $0x30] sm:$0xff] %vm22, -inf
    %30 = vst.msk [vmem:[#allocation2 + $0x38] sm:$0xff] %vm22, -inf
    %31 = vst.msk [vmem:[#allocation2 + $0x40] sm:$0xff] %vm22, -inf
    %32 = vst.msk [vmem:[#allocation2 + $0x48] sm:$0xff] %vm22, -inf
    %33 = vst.msk [vmem:[#allocation2 + $0x50] sm:$0xff] %vm22, -inf
    %34 = vst.msk [vmem:[#allocation2 + $0x58] sm:$0xff] %vm22, -inf
    %35 = vst.msk [vmem:[#allocation2 + $0x60] sm:$0xff] %vm22, -inf
    %36 = vst.msk [vmem:[#allocation2 + $0x68] sm:$0xff] %vm22, -inf
    %37 = vst.msk [vmem:[#allocation2 + $0x70] sm:$0xff] %vm22, -inf
    %38 = vst.msk [vmem:[#allocation2 + $0x78] sm:$0xff] %vm22, -inf
    %39 = vst.msk [vmem:[#allocation3] sm:$0xff] %vm22, 0.0
    %40 = vst.msk [vmem:[#allocation3 + $0x8] sm:$0xff] %vm22, 0.0
    %41 = vst.msk [vmem:[#allocation3 + $0x10] sm:$0xff] %vm22, 0.0
    %42 = vst.msk [vmem:[#allocation3 + $0x18] sm:$0xff] %vm22, 0.0
    %43 = vst.msk [vmem:[#allocation3 + $0x20] sm:$0xff] %vm22, 0.0
    %44 = vst.msk [vmem:[#allocation3 + $0x28] sm:$0xff] %vm22, 0.0
    %45 = vst.msk [vmem:[#allocation3 + $0x30] sm:$0xff] %vm22, 0.0
    %46 = vst.msk [vmem:[#allocation3 + $0x38] sm:$0xff] %vm22, 0.0
    %47 = vst.msk [vmem:[#allocation3 + $0x40] sm:$0xff] %vm22, 0.0
    %48 = vst.msk [vmem:[#allocation3 + $0x48] sm:$0xff] %vm22, 0.0
    %49 = vst.msk [vmem:[#allocation3 + $0x50] sm:$0xff] %vm22, 0.0
    %50 = vst.msk [vmem:[#allocation3 + $0x58] sm:$0xff] %vm22, 0.0
    %51 = vst.msk [vmem:[#allocation3 + $0x60] sm:$0xff] %vm22, 0.0
    %52 = vst.msk [vmem:[#allocation3 + $0x68] sm:$0xff] %vm22, 0.0
    %53 = vst.msk [vmem:[#allocation3 + $0x70] sm:$0xff] %vm22, 0.0
    %54 = vst.msk [vmem:[#allocation3 + $0x78] sm:$0xff] %vm22, 0.0
    %55 = vst.msk [vmem:[#allocation4] sm:$0xff] %vm22, 0.0
    %56 = vst.msk [vmem:[#allocation4 + $0x8] sm:$0xff] %vm22, 0.0
    %57 = vst.msk [vmem:[#allocation4 + $0x10] sm:$0xff] %vm22, 0.0
    %58 = vst.msk [vmem:[#allocation4 + $0x18] sm:$0xff] %vm22, 0.0
    %59 = vst.msk [vmem:[#allocation4 + $0x20] sm:$0xff] %vm22, 0.0
    %60 = vst.msk [vmem:[#allocation4 + $0x28] sm:$0xff] %vm22, 0.0
    %61 = vst.msk [vmem:[#allocation4 + $0x30] sm:$0xff] %vm22, 0.0
    %62 = vst.msk [vmem:[#allocation4 + $0x38] sm:$0xff] %vm22, 0.0
    %63 = vst.msk [vmem:[#allocation4 + $0x40] sm:$0xff] %vm22, 0.0
    %64 = vst.msk [vmem:[#allocation4 + $0x48] sm:$0xff] %vm22, 0.0
    %65 = vst.msk [vmem:[#allocation4 + $0x50] sm:$0xff] %vm22, 0.0
    %66 = vst.msk [vmem:[#allocation4 + $0x58] sm:$0xff] %vm22, 0.0
    %67 = vst.msk [vmem:[#allocation4 + $0x60] sm:$0xff] %vm22, 0.0
    %68 = vst.msk [vmem:[#allocation4 + $0x68] sm:$0xff] %vm22, 0.0
    %69 = vst.msk [vmem:[#allocation4 + $0x70] sm:$0xff] %vm22, 0.0
    %70 = vst.msk [vmem:[#allocation4 + $0x78] sm:$0xff] %vm22, 0.0
    %71 = vst.msk [vmem:[#allocation5] sm:$0xff] %vm22, 0.0
    %72 = vst.msk [vmem:[#allocation5 + $0x8] sm:$0xff] %vm22, 0.0
    %73 = vst.msk [vmem:[#allocation5 + $0x10] sm:$0xff] %vm22, 0.0
    %74 = vst.msk [vmem:[#allocation5 + $0x18] sm:$0xff] %vm22, 0.0
    %75 = vst.msk [vmem:[#allocation5 + $0x20] sm:$0xff] %vm22, 0.0
    %76 = vst.msk [vmem:[#allocation5 + $0x28] sm:$0xff] %vm22, 0.0
    %77 = vst.msk [vmem:[#allocation5 + $0x30] sm:$0xff] %vm22, 0.0
    %78 = vst.msk [vmem:[#allocation5 + $0x38] sm:$0xff] %vm22, 0.0
    %79 = vst.msk [vmem:[#allocation5 + $0x40] sm:$0xff] %vm22, 0.0
    %80 = vst.msk [vmem:[#allocation5 + $0x48] sm:$0xff] %vm22, 0.0
    %81 = vst.msk [vmem:[#allocation5 + $0x50] sm:$0xff] %vm22, 0.0
    %82 = vst.msk [vmem:[#allocation5 + $0x58] sm:$0xff] %vm22, 0.0
    %83 = vst.msk [vmem:[#allocation5 + $0x60] sm:$0xff] %vm22, 0.0
    %84 = vst.msk [vmem:[#allocation5 + $0x68] sm:$0xff] %vm22, 0.0
    %85 = vst.msk [vmem:[#allocation5 + $0x70] sm:$0xff] %vm22, 0.0
    %86 = vst.msk [vmem:[#allocation5 + $0x78] sm:$0xff] %vm22, 0.0
  $region21: #{tpu_custom_call.1} parent=0 // pred_fallthru
    _
  %v87 = vld [vmem:[%s2] sm:$0xf]
  %v88 = vld [vmem:[%s2 + $0x4] sm:$0xf]
  %v89 = vld [vmem:[%s2 + $0x8] sm:$0xf]
  %v90 = vld [vmem:[%s2 + $0xc] sm:$0xf]
  %v91 = vld [vmem:[%s2 + $0x10] sm:$0xf]
  %v92 = vld [vmem:[%s2 + $0x14] sm:$0xf]
  %v93 = vld [vmem:[%s2 + $0x18] sm:$0xf]
  %v94 = vld [vmem:[%s2 + $0x1c] sm:$0xf]
  %v95 = vld [vmem:[%s2 + $0x20] sm:$0xf]
  %v96 = vld [vmem:[%s2 + $0x24] sm:$0xf]
  %v97 = vld [vmem:[%s2 + $0x28] sm:$0xf]
  %v98 = vld [vmem:[%s2 + $0x2c] sm:$0xf]
  %v99 = vld [vmem:[%s2 + $0x30] sm:$0xf]
  %v100 = vld [vmem:[%s2 + $0x34] sm:$0xf]
  %v101 = vld [vmem:[%s2 + $0x38] sm:$0xf]
  %v102 = vld [vmem:[%s2 + $0x3c] sm:$0xf]
  %v103 = vld [vmem:[%s3] sm:$0xf]
  %v104 = vld [vmem:[%s3 + $0x4] sm:$0xf]
  %v105 = vld [vmem:[%s3 + $0x8] sm:$0xf]
  %v106 = vld [vmem:[%s3 + $0xc] sm:$0xf]
  %v107 = vld [vmem:[%s3 + $0x10] sm:$0xf]
  %v108 = vld [vmem:[%s3 + $0x14] sm:$0xf]
  %v109 = vld [vmem:[%s3 + $0x18] sm:$0xf]
  %v110 = vld [vmem:[%s3 + $0x1c] sm:$0xf]
  %v111 = vld [vmem:[%s3 + $0x20] sm:$0xf]
  %v112 = vld [vmem:[%s3 + $0x24] sm:$0xf]
  %v113 = vld [vmem:[%s3 + $0x28] sm:$0xf]
  %v114 = vld [vmem:[%s3 + $0x2c] sm:$0xf]
  %v115 = vld [vmem:[%s3 + $0x30] sm:$0xf]
  %v116 = vld [vmem:[%s3 + $0x34] sm:$0xf]
  %v117 = vld [vmem:[%s3 + $0x38] sm:$0xf]
  %v118 = vld [vmem:[%s3 + $0x3c] sm:$0xf]
  %v135 = vunpack.c.l.b16 %v87
  %v136 = vunpack.c.l.b16 %v88
  %v137 = vunpack.c.l.b16 %v89
  %v138 = vunpack.c.l.b16 %v90
  %v139 = vunpack.c.l.b16 %v91
  %v140 = vunpack.c.l.b16 %v92
  %v141 = vunpack.c.l.b16 %v93
  %v142 = vunpack.c.l.b16 %v94
  %v143 = vunpack.c.l.b16 %v95
  %v144 = vunpack.c.l.b16 %v96
  %v145 = vunpack.c.l.b16 %v97
  %v146 = vunpack.c.l.b16 %v98
  %v147 = vunpack.c.l.b16 %v99
  %v148 = vunpack.c.l.b16 %v100
  %v149 = vunpack.c.l.b16 %v101
  %v150 = vunpack.c.l.b16 %v102
  %v151 = vpack.c.b16 %v136, %v135
  %v152 = vpack.c.b16 %v138, %v137
  %v153 = vpack.c.b16 %v140, %v139
  %v154 = vpack.c.b16 %v142, %v141
  %v155 = vpack.c.b16 %v144, %v143
  %v156 = vpack.c.b16 %v146, %v145
  %v157 = vpack.c.b16 %v148, %v147
  %v158 = vpack.c.b16 %v150, %v149
  %v183 = vunpack.c.l.b16 %v103
  %v184 = vunpack.c.l.b16 %v104
  %v185 = vunpack.c.l.b16 %v105
  %v186 = vunpack.c.l.b16 %v106
  %v187 = vunpack.c.l.b16 %v107
  %v188 = vunpack.c.l.b16 %v108
  %v189 = vunpack.c.l.b16 %v109
  %v190 = vunpack.c.l.b16 %v110
  %v191 = vunpack.c.l.b16 %v111
  %v192 = vunpack.c.l.b16 %v112
  %v193 = vunpack.c.l.b16 %v113
  %v194 = vunpack.c.l.b16 %v114
  %v195 = vunpack.c.l.b16 %v115
  %v196 = vunpack.c.l.b16 %v116
  %v197 = vunpack.c.l.b16 %v117
  %v198 = vunpack.c.l.b16 %v118
  %v199 = vpack.c.b16 %v184, %v183
  %v200 = vpack.c.b16 %v186, %v185
  %v201 = vpack.c.b16 %v188, %v187
  %v202 = vpack.c.b16 %v190, %v189
  %v203 = vpack.c.b16 %v192, %v191
  %v204 = vpack.c.b16 %v194, %v193
  %v205 = vpack.c.b16 %v196, %v195
  %v206 = vpack.c.b16 %v198, %v197
  %215 = vmatprep.subr.bf16.mxu0 0
  %216 = vmatpush1.bf16.xpose.msra.mxu0 %v199
  %217 = vmatprep.subr.bf16.mxu0 0
  %218 = vmatpush1.bf16.xpose.msra.mxu0 %v200
  %219 = vmatprep.subr.bf16.mxu0 0
  %220 = vmatpush1.bf16.xpose.msra.mxu0 %v201
  %221 = vmatprep.subr.bf16.mxu0 0
  %222 = vmatpush1.bf16.xpose.msra.mxu0 %v202
  %223 = vmatprep.subr.bf16.mxu0 0
  %224 = vmatpush1.bf16.xpose.msra.mxu0 %v203
  %225 = vmatprep.subr.bf16.mxu0 0
  %226 = vmatpush1.bf16.xpose.msra.mxu0 %v204
  %227 = vmatprep.subr.bf16.mxu0 0
  %228 = vmatpush1.bf16.xpose.msra.mxu0 %v205
  %229 = vmatprep.subr.bf16.mxu0 0
  %230 = vmatpush1.bf16.xpose.msra.mxu0 %v206
  %231 = vmatprep.subr.bf16.mxu0 0
  %232 = vmatpush1.bf16.xpose.msra.mxu0 0
  %233 = vmatprep.subr.bf16.mxu0 0
  %234 = vmatpush1.bf16.xpose.msra.mxu0 0
  %235 = vmatprep.subr.bf16.mxu0 0
  %236 = vmatpush1.bf16.xpose.msra.mxu0 0
  %237 = vmatprep.subr.bf16.mxu0 0
  %238 = vmatpush1.bf16.xpose.msra.mxu0 0
  %239 = vmatprep.subr.bf16.mxu0 0
  %240 = vmatpush1.bf16.xpose.msra.mxu0 0
  %241 = vmatprep.subr.bf16.mxu0 0
  %242 = vmatpush1.bf16.xpose.msra.mxu0 0
  %243 = vmatprep.subr.bf16.mxu0 0
  %244 = vmatpush1.bf16.xpose.msra.mxu0 0
  %245 = vmatprep.subr.bf16.mxu0 0
  %246 = vmatpush1.bf16.xpose.msra.mxu0 0
  %247 = vmatprep.mubr.bf16.mxu0 0
  %248 = vmatmul.mubr.bf16.gmra.mrb[0].mxu0 %v151
  %v249 = vpop.f32.mrb[0].mxu0
  %v250 = vadd.f32 0.0, %v249
  %v251 = vpop.f32.mrb[0].mxu0
  %v252 = vpop.f32.mrb[0].mxu0
  %v253 = vadd.f32 0.0, %v252
  %v254 = vpop.f32.mrb[0].mxu0
  %255 = vmatprep.mubr.bf16.mxu0 0
  %256 = vmatmul.mubr.bf16.gmra.mrb[0].mxu0 %v152
  %v257 = vpop.f32.mrb[0].mxu0
  %v258 = vadd.f32 0.0, %v257
  %v259 = vpop.f32.mrb[0].mxu0
  %v260 = vpop.f32.mrb[0].mxu0
  %v261 = vadd.f32 0.0, %v260
  %v262 = vpop.f32.mrb[0].mxu0
  %263 = vmatprep.mubr.bf16.mxu0 0
  %264 = vmatmul.mubr.bf16.gmra.mrb[0].mxu0 %v153
  %v265 = vpop.f32.mrb[0].mxu0
  %v266 = vadd.f32 0.0, %v265
  %v267 = vpop.f32.mrb[0].mxu0
  %v268 = vpop.f32.mrb[0].mxu0
  %v269 = vadd.f32 0.0, %v268
  %v270 = vpop.f32.mrb[0].mxu0
  %271 = vmatprep.mubr.bf16.mxu0 0
  %272 = vmatmul.mubr.bf16.gmra.mrb[0].mxu0 %v154
  %v273 = vpop.f32.mrb[0].mxu0
  %v274 = vadd.f32 0.0, %v273
  %v275 = vpop.f32.mrb[0].mxu0
  %v276 = vpop.f32.mrb[0].mxu0
  %v277 = vadd.f32 0.0, %v276
  %v278 = vpop.f32.mrb[0].mxu0
  %279 = vmatprep.mubr.bf16.mxu0 0
  %280 = vmatmul.mubr.bf16.gmra.mrb[0].mxu0 %v155
  %v281 = vpop.f32.mrb[0].mxu0
  %v282 = vadd.f32 0.0, %v281
  %v283 = vpop.f32.mrb[0].mxu0
  %v284 = vpop.f32.mrb[0].mxu0
  %v285 = vadd.f32 0.0, %v284
  %v286 = vpop.f32.mrb[0].mxu0
  %287 = vmatprep.mubr.bf16.mxu0 0
  %288 = vmatmul.mubr.bf16.gmra.mrb[0].mxu0 %v156
  %v289 = vpop.f32.mrb[0].mxu0
  %v290 = vadd.f32 0.0, %v289
  %v291 = vpop.f32.mrb[0].mxu0
  %v292 = vpop.f32.mrb[0].mxu0
  %v293 = vadd.f32 0.0, %v292
  %v294 = vpop.f32.mrb[0].mxu0
  %295 = vmatprep.mubr.bf16.mxu0 0
  %296 = vmatmul.mubr.bf16.gmra.mrb[0].mxu0 %v157
  %v297 = vpop.f32.mrb[0].mxu0
  %v298 = vadd.f32 0.0, %v297
  %v299 = vpop.f32.mrb[0].mxu0
  %v300 = vpop.f32.mrb[0].mxu0
  %v301 = vadd.f32 0.0, %v300
  %v302 = vpop.f32.mrb[0].mxu0
  %303 = vmatprep.mubr.bf16.mxu0 0
  %304 = vmatmul.mubr.bf16.gmra.mrb[0].mxu0 %v158
  %v305 = vpop.f32.mrb[0].mxu0
  %v306 = vadd.f32 0.0, %v305
  %v307 = vpop.f32.mrb[0].mxu0
  %v308 = vpop.f32.mrb[0].mxu0
  %v309 = vadd.f32 0.0, %v308
  %v310 = vpop.f32.mrb[0].mxu0
  %311 = vdwg.mxu0
  %v312 = vld [vmem:[%s0] sm:$0xff]
  %v313 = vld [vmem:[%s0 + $0x8] sm:$0xff]
  %v314 = vld [vmem:[%s0 + $0x10] sm:$0xff]
  %v315 = vld [vmem:[%s0 + $0x18] sm:$0xff]
  %v316 = vld [vmem:[%s0 + $0x20] sm:$0xff]
  %v317 = vld [vmem:[%s0 + $0x28] sm:$0xff]
  %v318 = vld [vmem:[%s0 + $0x30] sm:$0xff]
  %v319 = vld [vmem:[%s0 + $0x38] sm:$0xff]
  %v320 = vld [vmem:[%s0 + $0x40] sm:$0xff]
  %v321 = vld [vmem:[%s0 + $0x48] sm:$0xff]
  %v322 = vld [vmem:[%s0 + $0x50] sm:$0xff]
  %v323 = vld [vmem:[%s0 + $0x58] sm:$0xff]
  %v324 = vld [vmem:[%s0 + $0x60] sm:$0xff]
  %v325 = vld [vmem:[%s0 + $0x68] sm:$0xff]
  %v326 = vld [vmem:[%s0 + $0x70] sm:$0xff]
  %v327 = vld [vmem:[%s0 + $0x78] sm:$0xff]
  %v328 = vld [vmem:[%s1] sm:$0x1]
  %329 = vset.pattern.permute.xlu0 0
  %330 = vperm.xlu0 %329, %v312
  %v331 = vpop.permute.xlu0 %330
  %332 = vset.pattern.permute.xlu0 0
  %333 = vperm.xlu0 %332, %v313
  %v334 = vpop.permute.xlu0 %333
  %335 = vset.pattern.permute.xlu0 0
  %336 = vperm.xlu0 %335, %v314
  %v337 = vpop.permute.xlu0 %336
  %338 = vset.pattern.permute.xlu0 0
  %339 = vperm.xlu0 %338, %v315
  %v340 = vpop.permute.xlu0 %339
  %341 = vset.pattern.permute.xlu0 0
  %342 = vperm.xlu0 %341, %v316
  %v343 = vpop.permute.xlu0 %342
  %344 = vset.pattern.permute.xlu0 0
  %345 = vperm.xlu0 %344, %v317
  %v346 = vpop.permute.xlu0 %345
  %347 = vset.pattern.permute.xlu0 0
  %348 = vperm.xlu0 %347, %v318
  %v349 = vpop.permute.xlu0 %348
  %350 = vset.pattern.permute.xlu0 0
  %351 = vperm.xlu0 %350, %v319
  %v352 = vpop.permute.xlu0 %351
  %353 = vset.pattern.permute.xlu0 0
  %354 = vperm.xlu0 %353, %v320
  %v355 = vpop.permute.xlu0 %354
  %356 = vset.pattern.permute.xlu0 0
  %357 = vperm.xlu0 %356, %v321
  %v358 = vpop.permute.xlu0 %357
  %359 = vset.pattern.permute.xlu0 0
  %360 = vperm.xlu0 %359, %v322
  %v361 = vpop.permute.xlu0 %360
  %362 = vset.pattern.permute.xlu0 0
  %363 = vperm.xlu0 %362, %v323
  %v364 = vpop.permute.xlu0 %363
  %365 = vset.pattern.permute.xlu0 0
  %366 = vperm.xlu0 %365, %v324
  %v367 = vpop.permute.xlu0 %366
  %368 = vset.pattern.permute.xlu0 0
  %369 = vperm.xlu0 %368, %v325
  %v370 = vpop.permute.xlu0 %369
  %371 = vset.pattern.permute.xlu0 0
  %372 = vperm.xlu0 %371, %v326
  %v373 = vpop.permute.xlu0 %372
  %374 = vset.pattern.permute.xlu0 0
  %375 = vperm.xlu0 %374, %v327
  %v376 = vpop.permute.xlu0 %375
  %v377 = vlaneseq
  %v378 = vshrl.u32 %v377, 7
  %v379 = vsub.s32 0, %v378
  %v380 = vrot.slane %v328, %v379
  %vm381 = vcmp.eq.s32.totalorder %v331, %v380
  %vm382 = vcmp.eq.s32.totalorder %v334, %v380
  %vm383 = vcmp.eq.s32.totalorder %v337, %v380
  %vm384 = vcmp.eq.s32.totalorder %v340, %v380
  %vm385 = vcmp.eq.s32.totalorder %v343, %v380
  %vm386 = vcmp.eq.s32.totalorder %v346, %v380
  %vm387 = vcmp.eq.s32.totalorder %v349, %v380
  %vm388 = vcmp.eq.s32.totalorder %v352, %v380
  %vm389 = vcmp.eq.s32.totalorder %v355, %v380
  %vm390 = vcmp.eq.s32.totalorder %v358, %v380
  %vm391 = vcmp.eq.s32.totalorder %v361, %v380
  %vm392 = vcmp.eq.s32.totalorder %v364, %v380
  %vm393 = vcmp.eq.s32.totalorder %v367, %v380
  %vm394 = vcmp.eq.s32.totalorder %v370, %v380
  %vm395 = vcmp.eq.s32.totalorder %v373, %v380
  %vm396 = vcmp.eq.s32.totalorder %v376, %v380
  %s397 = smul.u32 0, 128
  %s398 = smul.u32 0, 128
  %s399 = sadd.s32 %s398, 128
  %p400 = scmp.lt.s32.totalorder %s397, %s399
  %s401 = sadd.s32 %s397, 128
  %p402 = scmp.lt.s32.totalorder %s398, %s401
  %p403 = pnand %p400, %p402
  %p404 = pneg %p403
  %p405 = scmp.gt.s32.totalorder %s401, 16
  %p406 = scmp.gt.s32.totalorder %s399, 16
  %p407 = por %p405, %p406
  %p408 = por %p404, %p407
  // Predicated region
  $region22: #{tpu_custom_call.1} parent=0 // pred_check
    %p409 = pneg %p408
  $region23: #{tpu_custom_call.1} parent=0 // pred_check_branch
    %411 = sbr.rel (%p409) target = $region25
  $region24: #{tpu_custom_call.1} parent=0 // pred_region
    %v412 = vlaneseq
    %v413 = vshrl.u32 %v412, 7
    %v414 = vadd.s32 %v413, 8
    %v415 = vadd.s32 %v413, 16
    %v416 = vadd.s32 %v413, 24
    %v417 = vadd.s32 %v413, 32
    %v418 = vadd.s32 %v413, 40
    %v419 = vadd.s32 %v413, 48
    %v420 = vadd.s32 %v413, 56
    %v421 = vadd.s32 %v413, 64
    %v422 = vadd.s32 %v413, 72
    %v423 = vadd.s32 %v413, 80
    %v424 = vadd.s32 %v413, 88
    %v425 = vadd.s32 %v413, 96
    %v426 = vadd.s32 %v413, 104
    %v427 = vadd.s32 %v413, 112
    %v428 = vadd.s32 %v413, 120
    %v429 = vstv %s397
    %v430 = vadd.s32 %v429, %v413
    %v431 = vadd.s32 %v429, %v414
    %v432 = vadd.s32 %v429, %v415
    %v433 = vadd.s32 %v429, %v416
    %v434 = vadd.s32 %v429, %v417
    %v435 = vadd.s32 %v429, %v418
    %v436 = vadd.s32 %v429, %v419
    %v437 = vadd.s32 %v429, %v420
    %v438 = vadd.s32 %v429, %v421
    %v439 = vadd.s32 %v429, %v422
    %v440 = vadd.s32 %v429, %v423
    %v441 = vadd.s32 %v429, %v424
    %v442 = vadd.s32 %v429, %v425
    %v443 = vadd.s32 %v429, %v426
    %v444 = vadd.s32 %v429, %v427
    %v445 = vadd.s32 %v429, %v428
    %v446 = vlaneseq
    %v447 = vand.u32 %v446, 127
    %v448 = vstv %s398
    %v449 = vadd.s32 %v448, %v447
    %vm450 = vcmp.lt.s32.totalorder %v430, 16
    %vm451 = vcmp.lt.s32.totalorder %v431, 16
    %vm452 = vcmp.lt.s32.totalorder %v432, 16
    %vm453 = vcmp.lt.s32.totalorder %v433, 16
    %vm454 = vcmp.lt.s32.totalorder %v434, 16
    %vm455 = vcmp.lt.s32.totalorder %v435, 16
    %vm456 = vcmp.lt.s32.totalorder %v436, 16
    %vm457 = vcmp.lt.s32.totalorder %v437, 16
    %vm458 = vcmp.lt.s32.totalorder %v438, 16
    %vm459 = vcmp.lt.s32.totalorder %v439, 16
    %vm460 = vcmp.lt.s32.totalorder %v440, 16
    %vm461 = vcmp.lt.s32.totalorder %v441, 16
    %vm462 = vcmp.lt.s32.totalorder %v442, 16
    %vm463 = vcmp.lt.s32.totalorder %v443, 16
    %vm464 = vcmp.lt.s32.totalorder %v444, 16
    %vm465 = vcmp.lt.s32.totalorder %v445, 16
    %vm466 = vcmp.lt.s32.totalorder %v449, 16
    %vm467 = vmand %vm450, %vm466
    %vm468 = vmand %vm451, %vm466
    %vm469 = vmand %vm452, %vm466
    %vm470 = vmand %vm453, %vm466
    %vm471 = vmand %vm454, %vm466
    %vm472 = vmand %vm455, %vm466
    %vm473 = vmand %vm456, %vm466
    %vm474 = vmand %vm457, %vm466
    %vm475 = vmand %vm458, %vm466
    %vm476 = vmand %vm459, %vm466
    %vm477 = vmand %vm460, %vm466
    %vm478 = vmand %vm461, %vm466
    %vm479 = vmand %vm462, %vm466
    %vm480 = vmand %vm463, %vm466
    %vm481 = vmand %vm464, %vm466
    %vm482 = vmand %vm465, %vm466
    %vm483 = vcmp.ne.s32.totalorder %v430, %v449
    %vm484 = vcmp.ne.s32.totalorder %v431, %v449
    %vm485 = vcmp.ne.s32.totalorder %v432, %v449
    %vm486 = vcmp.ne.s32.totalorder %v433, %v449
    %vm487 = vcmp.ne.s32.totalorder %v434, %v449
    %vm488 = vcmp.ne.s32.totalorder %v435, %v449
    %vm489 = vcmp.ne.s32.totalorder %v436, %v449
    %vm490 = vcmp.ne.s32.totalorder %v437, %v449
    %vm491 = vcmp.ne.s32.totalorder %v438, %v449
    %vm492 = vcmp.ne.s32.totalorder %v439, %v449
    %vm493 = vcmp.ne.s32.totalorder %v440, %v449
    %vm494 = vcmp.ne.s32.totalorder %v441, %v449
    %vm495 = vcmp.ne.s32.totalorder %v442, %v449
    %vm496 = vcmp.ne.s32.totalorder %v443, %v449
    %vm497 = vcmp.ne.s32.totalorder %v444, %v449
    %vm498 = vcmp.ne.s32.totalorder %v445, %v449
    %vm499 = vmand %vm467, %vm483
    %vm500 = vmand %vm468, %vm484
    %vm501 = vmand %vm469, %vm485
    %vm502 = vmand %vm470, %vm486
    %vm503 = vmand %vm471, %vm487
    %vm504 = vmand %vm472, %vm488
    %vm505 = vmand %vm473, %vm489
    %vm506 = vmand %vm474, %vm490
    %vm507 = vmand %vm475, %vm491
    %vm508 = vmand %vm476, %vm492
    %vm509 = vmand %vm477, %vm493
    %vm510 = vmand %vm478, %vm494
    %vm511 = vmand %vm479, %vm495
    %vm512 = vmand %vm480, %vm496
    %vm513 = vmand %vm481, %vm497
    %vm514 = vmand %vm482, %vm498
    %v515 = vsel %vm499, 1, 0
    %v516 = vsel %vm500, 1, 0
    %v517 = vsel %vm501, 1, 0
    %v518 = vsel %vm502, 1, 0
    %v519 = vsel %vm503, 1, 0
    %v520 = vsel %vm504, 1, 0
    %v521 = vsel %vm505, 1, 0
    %v522 = vsel %vm506, 1, 0
    %v523 = vsel %vm507, 1, 0
    %v524 = vsel %vm508, 1, 0
    %v525 = vsel %vm509, 1, 0
    %v526 = vsel %vm510, 1, 0
    %v527 = vsel %vm511, 1, 0
    %v528 = vsel %vm512, 1, 0
    %v529 = vsel %vm513, 1, 0
    %v530 = vsel %vm514, 1, 0
    %v531 = vcvt.s32.f32 %v515
    %v532 = vcvt.s32.f32 %v516
    %v533 = vcvt.s32.f32 %v517
    %v534 = vcvt.s32.f32 %v518
    %v535 = vcvt.s32.f32 %v519
    %v536 = vcvt.s32.f32 %v520
    %v537 = vcvt.s32.f32 %v521
    %v538 = vcvt.s32.f32 %v522
    %v539 = vcvt.s32.f32 %v523
    %v540 = vcvt.s32.f32 %v524
    %v541 = vcvt.s32.f32 %v525
    %v542 = vcvt.s32.f32 %v526
    %v543 = vcvt.s32.f32 %v527
    %v544 = vcvt.s32.f32 %v528
    %v545 = vcvt.s32.f32 %v529
    %v546 = vcvt.s32.f32 %v530
    %vm547 = vmand %vm499, %vm381
    %vm548 = vmand %vm500, %vm382
    %vm549 = vmand %vm501, %vm383
    %vm550 = vmand %vm502, %vm384
    %vm551 = vmand %vm503, %vm385
    %vm552 = vmand %vm504, %vm386
    %vm553 = vmand %vm505, %vm387
    %vm554 = vmand %vm506, %vm388
    %vm555 = vmand %vm507, %vm389
    %vm556 = vmand %vm508, %vm390
    %vm557 = vmand %vm509, %vm391
    %vm558 = vmand %vm510, %vm392
    %vm559 = vmand %vm511, %vm393
    %vm560 = vmand %vm512, %vm394
    %vm561 = vmand %vm513, %vm395
    %vm562 = vmand %vm514, %vm396
    %v563 = vmul.f32 %v250, %v531
    %v564 = vmul.f32 %v253, %v532
    %v565 = vmul.f32 %v258, %v533
    %v566 = vmul.f32 %v261, %v534
    %v567 = vmul.f32 %v266, %v535
    %v568 = vmul.f32 %v269, %v536
    %v569 = vmul.f32 %v274, %v537
    %v570 = vmul.f32 %v277, %v538
    %v571 = vmul.f32 %v282, %v539
    %v572 = vmul.f32 %v285, %v540
    %v573 = vmul.f32 %v290, %v541
    %v574 = vmul.f32 %v293, %v542
    %v575 = vmul.f32 %v298, %v543
    %v576 = vmul.f32 %v301, %v544
    %v577 = vmul.f32 %v306, %v545
    %v578 = vmul.f32 %v309, %v546
    %v579 = vld [vmem:[#allocation2] sm:$0xff]
    %v580 = vld [vmem:[#allocation2 + $0x8] sm:$0xff]
    %v581 = vld [vmem:[#allocation2 + $0x10] sm:$0xff]
    %v582 = vld [vmem:[#allocation2 + $0x18] sm:$0xff]
    %v583 = vld [vmem:[#allocation2 + $0x20] sm:$0xff]
    %v584 = vld [vmem:[#allocation2 + $0x28] sm:$0xff]
    %v585 = vld [vmem:[#allocation2 + $0x30] sm:$0xff]
    %v586 = vld [vmem:[#allocation2 + $0x38] sm:$0xff]
    %v587 = vld [vmem:[#allocation2 + $0x40] sm:$0xff]
    %v588 = vld [vmem:[#allocation2 + $0x48] sm:$0xff]
    %v589 = vld [vmem:[#allocation2 + $0x50] sm:$0xff]
    %v590 = vld [vmem:[#allocation2 + $0x58] sm:$0xff]
    %v591 = vld [vmem:[#allocation2 + $0x60] sm:$0xff]
    %v592 = vld [vmem:[#allocation2 + $0x68] sm:$0xff]
    %v593 = vld [vmem:[#allocation2 + $0x70] sm:$0xff]
    %v594 = vld [vmem:[#allocation2 + $0x78] sm:$0xff]
    %595 = vmax.xlane.f32.xlu0 %v563
    %v596 = vpop.xlane.xlu0 %595
    %597 = vmax.xlane.f32.xlu0 %v564
    %v598 = vpop.xlane.xlu0 %597
    %599 = vmax.xlane.f32.xlu0 %v565
    %v600 = vpop.xlane.xlu0 %599
    %601 = vmax.xlane.f32.xlu0 %v566
    %v602 = vpop.xlane.xlu0 %601
    %603 = vmax.xlane.f32.xlu0 %v567
    %v604 = vpop.xlane.xlu0 %603
    %605 = vmax.xlane.f32.xlu0 %v568
    %v606 = vpop.xlane.xlu0 %605
    %607 = vmax.xlane.f32.xlu0 %v569
    %v608 = vpop.xlane.xlu0 %607
    %609 = vmax.xlane.f32.xlu0 %v570
    %v610 = vpop.xlane.xlu0 %609
    %611 = vmax.xlane.f32.xlu0 %v571
    %v612 = vpop.xlane.xlu0 %611
    %613 = vmax.xlane.f32.xlu0 %v572
    %v614 = vpop.xlane.xlu0 %613
    %615 = vmax.xlane.f32.xlu0 %v573
    %v616 = vpop.xlane.xlu0 %615
    %617 = vmax.xlane.f32.xlu0 %v574
    %v618 = vpop.xlane.xlu0 %617
    %619 = vmax.xlane.f32.xlu0 %v575
    %v620 = vpop.xlane.xlu0 %619
    %621 = vmax.xlane.f32.xlu0 %v576
    %v622 = vpop.xlane.xlu0 %621
    %623 = vmax.xlane.f32.xlu0 %v577
    %v624 = vpop.xlane.xlu0 %623
    %625 = vmax.xlane.f32.xlu0 %v578
    %v626 = vpop.xlane.xlu0 %625
    %v627 = vmax.f32 %v579, %v596
    %v628 = vmax.f32 %v580, %v598
    %v629 = vmax.f32 %v581, %v600
    %v630 = vmax.f32 %v582, %v602
    %v631 = vmax.f32 %v583, %v604
    %v632 = vmax.f32 %v584, %v606
    %v633 = vmax.f32 %v585, %v608
    %v634 = vmax.f32 %v586, %v610
    %v635 = vmax.f32 %v587, %v612
    %v636 = vmax.f32 %v588, %v614
    %v637 = vmax.f32 %v589, %v616
    %v638 = vmax.f32 %v590, %v618
    %v639 = vmax.f32 %v591, %v620
    %v640 = vmax.f32 %v592, %v622
    %v641 = vmax.f32 %v593, %v624
    %v642 = vmax.f32 %v594, %v626
    %v643 = vsub.f32 %v579, %v627
    %v644 = vsub.f32 %v580, %v628
    %v645 = vsub.f32 %v581, %v629
    %v646 = vsub.f32 %v582, %v630
    %v647 = vsub.f32 %v583, %v631
    %v648 = vsub.f32 %v584, %v632
    %v649 = vsub.f32 %v585, %v633
    %v650 = vsub.f32 %v586, %v634
    %v651 = vsub.f32 %v587, %v635
    %v652 = vsub.f32 %v588, %v636
    %v653 = vsub.f32 %v589, %v637
    %v654 = vsub.f32 %v590, %v638
    %v655 = vsub.f32 %v591, %v639
    %v656 = vsub.f32 %v592, %v640
    %v657 = vsub.f32 %v593, %v641
    %v658 = vsub.f32 %v594, %v642
    %v659 = vmul.f32 %v643, 1.442695
    %v660 = vpow.pop %v659
    %v661 = vmul.f32 %v644, 1.442695
    %v662 = vpow.pop %v661
    %v663 = vmul.f32 %v645, 1.442695
    %v664 = vpow.pop %v663
    %v665 = vmul.f32 %v646, 1.442695
    %v666 = vpow.pop %v665
    %v667 = vmul.f32 %v647, 1.442695
    %v668 = vpow.pop %v667
    %v669 = vmul.f32 %v648, 1.442695
    %v670 = vpow.pop %v669
    %v671 = vmul.f32 %v649, 1.442695
    %v672 = vpow.pop %v671
    %v673 = vmul.f32 %v650, 1.442695
    %v674 = vpow.pop %v673
    %v675 = vmul.f32 %v651, 1.442695
    %v676 = vpow.pop %v675
    %v677 = vmul.f32 %v652, 1.442695
    %v678 = vpow.pop %v677
    %v679 = vmul.f32 %v653, 1.442695
    %v680 = vpow.pop %v679
    %v681 = vmul.f32 %v654, 1.442695
    %v682 = vpow.pop %v681
    %v683 = vmul.f32 %v655, 1.442695
    %v684 = vpow.pop %v683
    %v685 = vmul.f32 %v656, 1.442695
    %v686 = vpow.pop %v685
    %v687 = vmul.f32 %v657, 1.442695
    %v688 = vpow.pop %v687
    %v689 = vmul.f32 %v658, 1.442695
    %v690 = vpow.pop %v689
    %692 = vset.pattern.permute.xlu0 0
    %693 = vperm.xlu0 %692, %v627
    %v694 = vpop.permute.xlu0 %693
    %697 = vset.pattern.permute.xlu0 0
    %698 = vperm.xlu0 %697, %v628
    %v699 = vpop.permute.xlu0 %698
    %702 = vset.pattern.permute.xlu0 0
    %703 = vperm.xlu0 %702, %v629
    %v704 = vpop.permute.xlu0 %703
    %707 = vset.pattern.permute.xlu0 0
    %708 = vperm.xlu0 %707, %v630
    %v709 = vpop.permute.xlu0 %708
    %712 = vset.pattern.permute.xlu0 0
    %713 = vperm.xlu0 %712, %v631
    %v714 = vpop.permute.xlu0 %713
    %717 = vset.pattern.permute.xlu0 0
    %718 = vperm.xlu0 %717, %v632
    %v719 = vpop.permute.xlu0 %718
    %722 = vset.pattern.permute.xlu0 0
    %723 = vperm.xlu0 %722, %v633
    %v724 = vpop.permute.xlu0 %723
    %727 = vset.pattern.permute.xlu0 0
    %728 = vperm.xlu0 %727, %v634
    %v729 = vpop.permute.xlu0 %728
    %732 = vset.pattern.permute.xlu0 0
    %733 = vperm.xlu0 %732, %v635
    %v734 = vpop.permute.xlu0 %733
    %737 = vset.pattern.permute.xlu0 0
    %738 = vperm.xlu0 %737, %v636
    %v739 = vpop.permute.xlu0 %738
    %742 = vset.pattern.permute.xlu0 0
    %743 = vperm.xlu0 %742, %v637
    %v744 = vpop.permute.xlu0 %743
    %747 = vset.pattern.permute.xlu0 0
    %748 = vperm.xlu0 %747, %v638
    %v749 = vpop.permute.xlu0 %748
    %752 = vset.pattern.permute.xlu0 0
    %753 = vperm.xlu0 %752, %v639
    %v754 = vpop.permute.xlu0 %753
    %757 = vset.pattern.permute.xlu0 0
    %758 = vperm.xlu0 %757, %v640
    %v759 = vpop.permute.xlu0 %758
    %762 = vset.pattern.permute.xlu0 0
    %763 = vperm.xlu0 %762, %v641
    %v764 = vpop.permute.xlu0 %763
    %767 = vset.pattern.permute.xlu0 0
    %768 = vperm.xlu0 %767, %v642
    %v769 = vpop.permute.xlu0 %768
    %v771 = vsub.f32 %v563, %v694
    %v772 = vsub.f32 %v564, %v699
    %v773 = vsub.f32 %v565, %v704
    %v774 = vsub.f32 %v566, %v709
    %v775 = vsub.f32 %v567, %v714
    %v776 = vsub.f32 %v568, %v719
    %v777 = vsub.f32 %v569, %v724
    %v778 = vsub.f32 %v570, %v729
    %v779 = vsub.f32 %v571, %v734
    %v780 = vsub.f32 %v572, %v739
    %v781 = vsub.f32 %v573, %v744
    %v782 = vsub.f32 %v574, %v749
    %v783 = vsub.f32 %v575, %v754
    %v784 = vsub.f32 %v576, %v759
    %v785 = vsub.f32 %v577, %v764
    %v786 = vsub.f32 %v578, %v769
    %v787 = vmul.f32 %v771, 1.442695
    %v788 = vpow.pop %v787
    %v789 = vmul.f32 %v772, 1.442695
    %v790 = vpow.pop %v789
    %v791 = vmul.f32 %v773, 1.442695
    %v792 = vpow.pop %v791
    %v793 = vmul.f32 %v774, 1.442695
    %v794 = vpow.pop %v793
    %v795 = vmul.f32 %v775, 1.442695
    %v796 = vpow.pop %v795
    %v797 = vmul.f32 %v776, 1.442695
    %v798 = vpow.pop %v797
    %v799 = vmul.f32 %v777, 1.442695
    %v800 = vpow.pop %v799
    %v801 = vmul.f32 %v778, 1.442695
    %v802 = vpow.pop %v801
    %v803 = vmul.f32 %v779, 1.442695
    %v804 = vpow.pop %v803
    %v805 = vmul.f32 %v780, 1.442695
    %v806 = vpow.pop %v805
    %v807 = vmul.f32 %v781, 1.442695
    %v808 = vpow.pop %v807
    %v809 = vmul.f32 %v782, 1.442695
    %v810 = vpow.pop %v809
    %v811 = vmul.f32 %v783, 1.442695
    %v812 = vpow.pop %v811
    %v813 = vmul.f32 %v784, 1.442695
    %v814 = vpow.pop %v813
    %v815 = vmul.f32 %v785, 1.442695
    %v816 = vpow.pop %v815
    %v817 = vmul.f32 %v786, 1.442695
    %v818 = vpow.pop %v817
    %v819 = vmul.f32 %v788, %v531
    %v820 = vmul.f32 %v790, %v532
    %v821 = vmul.f32 %v792, %v533
    %v822 = vmul.f32 %v794, %v534
    %v823 = vmul.f32 %v796, %v535
    %v824 = vmul.f32 %v798, %v536
    %v825 = vmul.f32 %v800, %v537
    %v826 = vmul.f32 %v802, %v538
    %v827 = vmul.f32 %v804, %v539
    %v828 = vmul.f32 %v806, %v540
    %v829 = vmul.f32 %v808, %v541
    %v830 = vmul.f32 %v810, %v542
    %v831 = vmul.f32 %v812, %v543
    %v832 = vmul.f32 %v814, %v544
    %v833 = vmul.f32 %v816, %v545
    %v834 = vmul.f32 %v818, %v546
    %v835 = vld [vmem:[#allocation3] sm:$0xff]
    %v836 = vld [vmem:[#allocation3 + $0x8] sm:$0xff]
    %v837 = vld [vmem:[#allocation3 + $0x10] sm:$0xff]
    %v838 = vld [vmem:[#allocation3 + $0x18] sm:$0xff]
    %v839 = vld [vmem:[#allocation3 + $0x20] sm:$0xff]
    %v840 = vld [vmem:[#allocation3 + $0x28] sm:$0xff]
    %v841 = vld [vmem:[#allocation3 + $0x30] sm:$0xff]
    %v842 = vld [vmem:[#allocation3 + $0x38] sm:$0xff]
    %v843 = vld [vmem:[#allocation3 + $0x40] sm:$0xff]
    %v844 = vld [vmem:[#allocation3 + $0x48] sm:$0xff]
    %v845 = vld [vmem:[#allocation3 + $0x50] sm:$0xff]
    %v846 = vld [vmem:[#allocation3 + $0x58] sm:$0xff]
    %v847 = vld [vmem:[#allocation3 + $0x60] sm:$0xff]
    %v848 = vld [vmem:[#allocation3 + $0x68] sm:$0xff]
    %v849 = vld [vmem:[#allocation3 + $0x70] sm:$0xff]
    %v850 = vld [vmem:[#allocation3 + $0x78] sm:$0xff]
    %v851 = vmul.f32 %v660, %v835
    %v852 = vmul.f32 %v662, %v836
    %v853 = vmul.f32 %v664, %v837
    %v854 = vmul.f32 %v666, %v838
    %v855 = vmul.f32 %v668, %v839
    %v856 = vmul.f32 %v670, %v840
    %v857 = vmul.f32 %v672, %v841
    %v858 = vmul.f32 %v674, %v842
    %v859 = vmul.f32 %v676, %v843
    %v860 = vmul.f32 %v678, %v844
    %v861 = vmul.f32 %v680, %v845
    %v862 = vmul.f32 %v682, %v846
    %v863 = vmul.f32 %v684, %v847
    %v864 = vmul.f32 %v686, %v848
    %v865 = vmul.f32 %v688, %v849
    %v866 = vmul.f32 %v690, %v850
    %867 = vadd.xlane.f32.xlu0 %v819
    %v868 = vpop.xlane.xlu0 %867
    %869 = vadd.xlane.f32.xlu0 %v820
    %v870 = vpop.xlane.xlu0 %869
    %871 = vadd.xlane.f32.xlu0 %v821
    %v872 = vpop.xlane.xlu0 %871
    %873 = vadd.xlane.f32.xlu0 %v822
    %v874 = vpop.xlane.xlu0 %873
    %875 = vadd.xlane.f32.xlu0 %v823
    %v876 = vpop.xlane.xlu0 %875
    %877 = vadd.xlane.f32.xlu0 %v824
    %v878 = vpop.xlane.xlu0 %877
    %879 = vadd.xlane.f32.xlu0 %v825
    %v880 = vpop.xlane.xlu0 %879
    %881 = vadd.xlane.f32.xlu0 %v826
    %v882 = vpop.xlane.xlu0 %881
    %883 = vadd.xlane.f32.xlu0 %v827
    %v884 = vpop.xlane.xlu0 %883
    %885 = vadd.xlane.f32.xlu0 %v828
    %v886 = vpop.xlane.xlu0 %885
    %887 = vadd.xlane.f32.xlu0 %v829
    %v888 = vpop.xlane.xlu0 %887
    %889 = vadd.xlane.f32.xlu0 %v830
    %v890 = vpop.xlane.xlu0 %889
    %891 = vadd.xlane.f32.xlu0 %v831
    %v892 = vpop.xlane.xlu0 %891
    %893 = vadd.xlane.f32.xlu0 %v832
    %v894 = vpop.xlane.xlu0 %893
    %895 = vadd.xlane.f32.xlu0 %v833
    %v896 = vpop.xlane.xlu0 %895
    %897 = vadd.xlane.f32.xlu0 %v834
    %v898 = vpop.xlane.xlu0 %897
    %v899 = vadd.f32 %v851, %v868
    %v900 = vadd.f32 %v852, %v870
    %v901 = vadd.f32 %v853, %v872
    %v902 = vadd.f32 %v854, %v874
    %v903 = vadd.f32 %v855, %v876
    %v904 = vadd.f32 %v856, %v878
    %v905 = vadd.f32 %v857, %v880
    %v906 = vadd.f32 %v858, %v882
    %v907 = vadd.f32 %v859, %v884
    %v908 = vadd.f32 %v860, %v886
    %v909 = vadd.f32 %v861, %v888
    %v910 = vadd.f32 %v862, %v890
    %v911 = vadd.f32 %v863, %v892
    %v912 = vadd.f32 %v864, %v894
    %v913 = vadd.f32 %v865, %v896
    %v914 = vadd.f32 %v866, %v898
    %vm915 = vcmask 7168
    %916 = vst.msk [vmem:[#allocation3] sm:$0xff] %vm915, %v899
    %917 = vst.msk [vmem:[#allocation3 + $0x8] sm:$0xff] %vm915, %v900
    %918 = vst.msk [vmem:[#allocation3 + $0x10] sm:$0xff] %vm915, %v901
    %919 = vst.msk [vmem:[#allocation3 + $0x18] sm:$0xff] %vm915, %v902
    %920 = vst.msk [vmem:[#allocation3 + $0x20] sm:$0xff] %vm915, %v903
    %921 = vst.msk [vmem:[#allocation3 + $0x28] sm:$0xff] %vm915, %v904
    %922 = vst.msk [vmem:[#allocation3 + $0x30] sm:$0xff] %vm915, %v905
    %923 = vst.msk [vmem:[#allocation3 + $0x38] sm:$0xff] %vm915, %v906
    %924 = vst.msk [vmem:[#allocation3 + $0x40] sm:$0xff] %vm915, %v907
    %925 = vst.msk [vmem:[#allocation3 + $0x48] sm:$0xff] %vm915, %v908
    %926 = vst.msk [vmem:[#allocation3 + $0x50] sm:$0xff] %vm915, %v909
    %927 = vst.msk [vmem:[#allocation3 + $0x58] sm:$0xff] %vm915, %v910
    %928 = vst.msk [vmem:[#allocation3 + $0x60] sm:$0xff] %vm915, %v911
    %929 = vst.msk [vmem:[#allocation3 + $0x68] sm:$0xff] %vm915, %v912
    %930 = vst.msk [vmem:[#allocation3 + $0x70] sm:$0xff] %vm915, %v913
    %931 = vst.msk [vmem:[#allocation3 + $0x78] sm:$0xff] %vm915, %v914
    %932 = vst.msk [vmem:[#allocation2] sm:$0xff] %vm915, %v627
    %933 = vst.msk [vmem:[#allocation2 + $0x8] sm:$0xff] %vm915, %v628
    %934 = vst.msk [vmem:[#allocation2 + $0x10] sm:$0xff] %vm915, %v629
    %935 = vst.msk [vmem:[#allocation2 + $0x18] sm:$0xff] %vm915, %v630
    %936 = vst.msk [vmem:[#allocation2 + $0x20] sm:$0xff] %vm915, %v631
    %937 = vst.msk [vmem:[#allocation2 + $0x28] sm:$0xff] %vm915, %v632
    %938 = vst.msk [vmem:[#allocation2 + $0x30] sm:$0xff] %vm915, %v633
    %939 = vst.msk [vmem:[#allocation2 + $0x38] sm:$0xff] %vm915, %v634
    %940 = vst.msk [vmem:[#allocation2 + $0x40] sm:$0xff] %vm915, %v635
    %941 = vst.msk [vmem:[#allocation2 + $0x48] sm:$0xff] %vm915, %v636
    %942 = vst.msk [vmem:[#allocation2 + $0x50] sm:$0xff] %vm915, %v637
    %943 = vst.msk [vmem:[#allocation2 + $0x58] sm:$0xff] %vm915, %v638
    %944 = vst.msk [vmem:[#allocation2 + $0x60] sm:$0xff] %vm915, %v639
    %945 = vst.msk [vmem:[#allocation2 + $0x68] sm:$0xff] %vm915, %v640
    %946 = vst.msk [vmem:[#allocation2 + $0x70] sm:$0xff] %vm915, %v641
    %947 = vst.msk [vmem:[#allocation2 + $0x78] sm:$0xff] %vm915, %v642
    %v948 = vld [vmem:[#allocation4] sm:$0xff]
    %v949 = vld [vmem:[#allocation4 + $0x8] sm:$0xff]
    %v950 = vld [vmem:[#allocation4 + $0x10] sm:$0xff]
    %v951 = vld [vmem:[#allocation4 + $0x18] sm:$0xff]
    %v952 = vld [vmem:[#allocation4 + $0x20] sm:$0xff]
    %v953 = vld [vmem:[#allocation4 + $0x28] sm:$0xff]
    %v954 = vld [vmem:[#allocation4 + $0x30] sm:$0xff]
    %v955 = vld [vmem:[#allocation4 + $0x38] sm:$0xff]
    %v956 = vld [vmem:[#allocation4 + $0x40] sm:$0xff]
    %v957 = vld [vmem:[#allocation4 + $0x48] sm:$0xff]
    %v958 = vld [vmem:[#allocation4 + $0x50] sm:$0xff]
    %v959 = vld [vmem:[#allocation4 + $0x58] sm:$0xff]
    %v960 = vld [vmem:[#allocation4 + $0x60] sm:$0xff]
    %v961 = vld [vmem:[#allocation4 + $0x68] sm:$0xff]
    %v962 = vld [vmem:[#allocation4 + $0x70] sm:$0xff]
    %v963 = vld [vmem:[#allocation4 + $0x78] sm:$0xff]
    %v964 = vsel %vm547, %v563, 0.0
    %v965 = vsel %vm548, %v564, 0.0
    %v966 = vsel %vm549, %v565, 0.0
    %v967 = vsel %vm550, %v566, 0.0
    %v968 = vsel %vm551, %v567, 0.0
    %v969 = vsel %vm552, %v568, 0.0
    %v970 = vsel %vm553, %v569, 0.0
    %v971 = vsel %vm554, %v570, 0.0
    %v972 = vsel %vm555, %v571, 0.0
    %v973 = vsel %vm556, %v572, 0.0
    %v974 = vsel %vm557, %v573, 0.0
    %v975 = vsel %vm558, %v574, 0.0
    %v976 = vsel %vm559, %v575, 0.0
    %v977 = vsel %vm560, %v576, 0.0
    %v978 = vsel %vm561, %v577, 0.0
    %v979 = vsel %vm562, %v578, 0.0
    %980 = vadd.xlane.f32.xlu0 %v964
    %v981 = vpop.xlane.xlu0 %980
    %982 = vadd.xlane.f32.xlu0 %v965
    %v983 = vpop.xlane.xlu0 %982
    %984 = vadd.xlane.f32.xlu0 %v966
    %v985 = vpop.xlane.xlu0 %984
    %986 = vadd.xlane.f32.xlu0 %v967
    %v987 = vpop.xlane.xlu0 %986
    %988 = vadd.xlane.f32.xlu0 %v968
    %v989 = vpop.xlane.xlu0 %988
    %990 = vadd.xlane.f32.xlu0 %v969
    %v991 = vpop.xlane.xlu0 %990
    %992 = vadd.xlane.f32.xlu0 %v970
    %v993 = vpop.xlane.xlu0 %992
    %994 = vadd.xlane.f32.xlu0 %v971
    %v995 = vpop.xlane.xlu0 %994
    %996 = vadd.xlane.f32.xlu0 %v972
    %v997 = vpop.xlane.xlu0 %996
    %998 = vadd.xlane.f32.xlu0 %v973
    %v999 = vpop.xlane.xlu0 %998
    %1000 = vadd.xlane.f32.xlu0 %v974
    %v1001 = vpop.xlane.xlu0 %1000
    %1002 = vadd.xlane.f32.xlu0 %v975
    %v1003 = vpop.xlane.xlu0 %1002
    %1004 = vadd.xlane.f32.xlu0 %v976
    %v1005 = vpop.xlane.xlu0 %1004
    %1006 = vadd.xlane.f32.xlu0 %v977
    %v1007 = vpop.xlane.xlu0 %1006
    %1008 = vadd.xlane.f32.xlu0 %v978
    %v1009 = vpop.xlane.xlu0 %1008
    %1010 = vadd.xlane.f32.xlu0 %v979
    %v1011 = vpop.xlane.xlu0 %1010
    %v1012 = vadd.f32 %v948, %v981
    %v1013 = vadd.f32 %v949, %v983
    %v1014 = vadd.f32 %v950, %v985
    %v1015 = vadd.f32 %v951, %v987
    %v1016 = vadd.f32 %v952, %v989
    %v1017 = vadd.f32 %v953, %v991
    %v1018 = vadd.f32 %v954, %v993
    %v1019 = vadd.f32 %v955, %v995
    %v1020 = vadd.f32 %v956, %v997
    %v1021 = vadd.f32 %v957, %v999
    %v1022 = vadd.f32 %v958, %v1001
    %v1023 = vadd.f32 %v959, %v1003
    %v1024 = vadd.f32 %v960, %v1005
    %v1025 = vadd.f32 %v961, %v1007
    %v1026 = vadd.f32 %v962, %v1009
    %v1027 = vadd.f32 %v963, %v1011
    %1028 = vst.msk [vmem:[#allocation4] sm:$0xff] %vm915, %v1012
    %1029 = vst.msk [vmem:[#allocation4 + $0x8] sm:$0xff] %vm915, %v1013
    %1030 = vst.msk [vmem:[#allocation4 + $0x10] sm:$0xff] %vm915, %v1014
    %1031 = vst.msk [vmem:[#allocation4 + $0x18] sm:$0xff] %vm915, %v1015
    %1032 = vst.msk [vmem:[#allocation4 + $0x20] sm:$0xff] %vm915, %v1016
    %1033 = vst.msk [vmem:[#allocation4 + $0x28] sm:$0xff] %vm915, %v1017
    %1034 = vst.msk [vmem:[#allocation4 + $0x30] sm:$0xff] %vm915, %v1018
    %1035 = vst.msk [vmem:[#allocation4 + $0x38] sm:$0xff] %vm915, %v1019
    %1036 = vst.msk [vmem:[#allocation4 + $0x40] sm:$0xff] %vm915, %v1020
    %1037 = vst.msk [vmem:[#allocation4 + $0x48] sm:$0xff] %vm915, %v1021
    %1038 = vst.msk [vmem:[#allocation4 + $0x50] sm:$0xff] %vm915, %v1022
    %1039 = vst.msk [vmem:[#allocation4 + $0x58] sm:$0xff] %vm915, %v1023
    %1040 = vst.msk [vmem:[#allocation4 + $0x60] sm:$0xff] %vm915, %v1024
    %1041 = vst.msk [vmem:[#allocation4 + $0x68] sm:$0xff] %vm915, %v1025
    %1042 = vst.msk [vmem:[#allocation4 + $0x70] sm:$0xff] %vm915, %v1026
    %1043 = vst.msk [vmem:[#allocation4 + $0x78] sm:$0xff] %vm915, %v1027
    %v1044 = vld [vmem:[#allocation5] sm:$0xff]
    %v1045 = vld [vmem:[#allocation5 + $0x8] sm:$0xff]
    %v1046 = vld [vmem:[#allocation5 + $0x10] sm:$0xff]
    %v1047 = vld [vmem:[#allocation5 + $0x18] sm:$0xff]
    %v1048 = vld [vmem:[#allocation5 + $0x20] sm:$0xff]
    %v1049 = vld [vmem:[#allocation5 + $0x28] sm:$0xff]
    %v1050 = vld [vmem:[#allocation5 + $0x30] sm:$0xff]
    %v1051 = vld [vmem:[#allocation5 + $0x38] sm:$0xff]
    %v1052 = vld [vmem:[#allocation5 + $0x40] sm:$0xff]
    %v1053 = vld [vmem:[#allocation5 + $0x48] sm:$0xff]
    %v1054 = vld [vmem:[#allocation5 + $0x50] sm:$0xff]
    %v1055 = vld [vmem:[#allocation5 + $0x58] sm:$0xff]
    %v1056 = vld [vmem:[#allocation5 + $0x60] sm:$0xff]
    %v1057 = vld [vmem:[#allocation5 + $0x68] sm:$0xff]
    %v1058 = vld [vmem:[#allocation5 + $0x70] sm:$0xff]
    %v1059 = vld [vmem:[#allocation5 + $0x78] sm:$0xff]
    %v1060 = vsel %vm547, 1, 0
    %v1061 = vsel %vm548, 1, 0
    %v1062 = vsel %vm549, 1, 0
    %v1063 = vsel %vm550, 1, 0
    %v1064 = vsel %vm551, 1, 0
    %v1065 = vsel %vm552, 1, 0
    %v1066 = vsel %vm553, 1, 0
    %v1067 = vsel %vm554, 1, 0
    %v1068 = vsel %vm555, 1, 0
    %v1069 = vsel %vm556, 1, 0
    %v1070 = vsel %vm557, 1, 0
    %v1071 = vsel %vm558, 1, 0
    %v1072 = vsel %vm559, 1, 0
    %v1073 = vsel %vm560, 1, 0
    %v1074 = vsel %vm561, 1, 0
    %v1075 = vsel %vm562, 1, 0
    %v1076 = vcvt.s32.f32 %v1060
    %v1077 = vcvt.s32.f32 %v1061
    %v1078 = vcvt.s32.f32 %v1062
    %v1079 = vcvt.s32.f32 %v1063
    %v1080 = vcvt.s32.f32 %v1064
    %v1081 = vcvt.s32.f32 %v1065
    %v1082 = vcvt.s32.f32 %v1066
    %v1083 = vcvt.s32.f32 %v1067
    %v1084 = vcvt.s32.f32 %v1068
    %v1085 = vcvt.s32.f32 %v1069
    %v1086 = vcvt.s32.f32 %v1070
    %v1087 = vcvt.s32.f32 %v1071
    %v1088 = vcvt.s32.f32 %v1072
    %v1089 = vcvt.s32.f32 %v1073
    %v1090 = vcvt.s32.f32 %v1074
    %v1091 = vcvt.s32.f32 %v1075
    %1092 = vadd.xlane.f32.xlu0 %v1076
    %v1093 = vpop.xlane.xlu0 %1092
    %1094 = vadd.xlane.f32.xlu0 %v1077
    %v1095 = vpop.xlane.xlu0 %1094
    %1096 = vadd.xlane.f32.xlu0 %v1078
    %v1097 = vpop.xlane.xlu0 %1096
    %1098 = vadd.xlane.f32.xlu0 %v1079
    %v1099 = vpop.xlane.xlu0 %1098
    %1100 = vadd.xlane.f32.xlu0 %v1080
    %v1101 = vpop.xlane.xlu0 %1100
    %1102 = vadd.xlane.f32.xlu0 %v1081
    %v1103 = vpop.xlane.xlu0 %1102
    %1104 = vadd.xlane.f32.xlu0 %v1082
    %v1105 = vpop.xlane.xlu0 %1104
    %1106 = vadd.xlane.f32.xlu0 %v1083
    %v1107 = vpop.xlane.xlu0 %1106
    %1108 = vadd.xlane.f32.xlu0 %v1084
    %v1109 = vpop.xlane.xlu0 %1108
    %1110 = vadd.xlane.f32.xlu0 %v1085
    %v1111 = vpop.xlane.xlu0 %1110
    %1112 = vadd.xlane.f32.xlu0 %v1086
    %v1113 = vpop.xlane.xlu0 %1112
    %1114 = vadd.xlane.f32.xlu0 %v1087
    %v1115 = vpop.xlane.xlu0 %1114
    %1116 = vadd.xlane.f32.xlu0 %v1088
    %v1117 = vpop.xlane.xlu0 %1116
    %1118 = vadd.xlane.f32.xlu0 %v1089
    %v1119 = vpop.xlane.xlu0 %1118
    %1120 = vadd.xlane.f32.xlu0 %v1090
    %v1121 = vpop.xlane.xlu0 %1120
    %1122 = vadd.xlane.f32.xlu0 %v1091
    %v1123 = vpop.xlane.xlu0 %1122
    %v1124 = vadd.f32 %v1044, %v1093
    %v1125 = vadd.f32 %v1045, %v1095
    %v1126 = vadd.f32 %v1046, %v1097
    %v1127 = vadd.f32 %v1047, %v1099
    %v1128 = vadd.f32 %v1048, %v1101
    %v1129 = vadd.f32 %v1049, %v1103
    %v1130 = vadd.f32 %v1050, %v1105
    %v1131 = vadd.f32 %v1051, %v1107
    %v1132 = vadd.f32 %v1052, %v1109
    %v1133 = vadd.f32 %v1053, %v1111
    %v1134 = vadd.f32 %v1054, %v1113
    %v1135 = vadd.f32 %v1055, %v1115
    %v1136 = vadd.f32 %v1056, %v1117
    %v1137 = vadd.f32 %v1057, %v1119
    %v1138 = vadd.f32 %v1058, %v1121
    %v1139 = vadd.f32 %v1059, %v1123
    %1140 = vst.msk [vmem:[#allocation5] sm:$0xff] %vm915, %v1124
    %1141 = vst.msk [vmem:[#allocation5 + $0x8] sm:$0xff] %vm915, %v1125
    %1142 = vst.msk [vmem:[#allocation5 + $0x10] sm:$0xff] %vm915, %v1126
    %1143 = vst.msk [vmem:[#allocation5 + $0x18] sm:$0xff] %vm915, %v1127
    %1144 = vst.msk [vmem:[#allocation5 + $0x20] sm:$0xff] %vm915, %v1128
    %1145 = vst.msk [vmem:[#allocation5 + $0x28] sm:$0xff] %vm915, %v1129
    %1146 = vst.msk [vmem:[#allocation5 + $0x30] sm:$0xff] %vm915, %v1130
    %1147 = vst.msk [vmem:[#allocation5 + $0x38] sm:$0xff] %vm915, %v1131
    %1148 = vst.msk [vmem:[#allocation5 + $0x40] sm:$0xff] %vm915, %v1132
    %1149 = vst.msk [vmem:[#allocation5 + $0x48] sm:$0xff] %vm915, %v1133
    %1150 = vst.msk [vmem:[#allocation5 + $0x50] sm:$0xff] %vm915, %v1134
    %1151 = vst.msk [vmem:[#allocation5 + $0x58] sm:$0xff] %vm915, %v1135
    %1152 = vst.msk [vmem:[#allocation5 + $0x60] sm:$0xff] %vm915, %v1136
    %1153 = vst.msk [vmem:[#allocation5 + $0x68] sm:$0xff] %vm915, %v1137
    %1154 = vst.msk [vmem:[#allocation5 + $0x70] sm:$0xff] %vm915, %v1138
    %1155 = vst.msk [vmem:[#allocation5 + $0x78] sm:$0xff] %vm915, %v1139
  $region25: #{tpu_custom_call.1} parent=0 // pred_fallthru
    _
  %p1156 = pneg %p408
  // Predicated region
  $region26: #{tpu_custom_call.1} parent=0 // pred_check
    _
  $region27: #{tpu_custom_call.1} parent=0 // pred_check_branch
    %1158 = sbr.rel (%p408) target = $region29
  $region28: #{tpu_custom_call.1} parent=0 // pred_region
    %v1159 = vld [vmem:[#allocation2] sm:$0xff]
    %v1160 = vld [vmem:[#allocation2 + $0x8] sm:$0xff]
    %v1161 = vld [vmem:[#allocation2 + $0x10] sm:$0xff]
    %v1162 = vld [vmem:[#allocation2 + $0x18] sm:$0xff]
    %v1163 = vld [vmem:[#allocation2 + $0x20] sm:$0xff]
    %v1164 = vld [vmem:[#allocation2 + $0x28] sm:$0xff]
    %v1165 = vld [vmem:[#allocation2 + $0x30] sm:$0xff]
    %v1166 = vld [vmem:[#allocation2 + $0x38] sm:$0xff]
    %v1167 = vld [vmem:[#allocation2 + $0x40] sm:$0xff]
    %v1168 = vld [vmem:[#allocation2 + $0x48] sm:$0xff]
    %v1169 = vld [vmem:[#allocation2 + $0x50] sm:$0xff]
    %v1170 = vld [vmem:[#allocation2 + $0x58] sm:$0xff]
    %v1171 = vld [vmem:[#allocation2 + $0x60] sm:$0xff]
    %v1172 = vld [vmem:[#allocation2 + $0x68] sm:$0xff]
    %v1173 = vld [vmem:[#allocation2 + $0x70] sm:$0xff]
    %v1174 = vld [vmem:[#allocation2 + $0x78] sm:$0xff]
    %1175 = vmax.xlane.f32.xlu0 %v250
    %v1176 = vpop.xlane.xlu0 %1175
    %1177 = vmax.xlane.f32.xlu0 %v253
    %v1178 = vpop.xlane.xlu0 %1177
    %1179 = vmax.xlane.f32.xlu0 %v258
    %v1180 = vpop.xlane.xlu0 %1179
    %1181 = vmax.xlane.f32.xlu0 %v261
    %v1182 = vpop.xlane.xlu0 %1181
    %1183 = vmax.xlane.f32.xlu0 %v266
    %v1184 = vpop.xlane.xlu0 %1183
    %1185 = vmax.xlane.f32.xlu0 %v269
    %v1186 = vpop.xlane.xlu0 %1185
    %1187 = vmax.xlane.f32.xlu0 %v274
    %v1188 = vpop.xlane.xlu0 %1187
    %1189 = vmax.xlane.f32.xlu0 %v277
    %v1190 = vpop.xlane.xlu0 %1189
    %1191 = vmax.xlane.f32.xlu0 %v282
    %v1192 = vpop.xlane.xlu0 %1191
    %1193 = vmax.xlane.f32.xlu0 %v285
    %v1194 = vpop.xlane.xlu0 %1193
    %1195 = vmax.xlane.f32.xlu0 %v290
    %v1196 = vpop.xlane.xlu0 %1195
    %1197 = vmax.xlane.f32.xlu0 %v293
    %v1198 = vpop.xlane.xlu0 %1197
    %1199 = vmax.xlane.f32.xlu0 %v298
    %v1200 = vpop.xlane.xlu0 %1199
    %1201 = vmax.xlane.f32.xlu0 %v301
    %v1202 = vpop.xlane.xlu0 %1201
    %1203 = vmax.xlane.f32.xlu0 %v306
    %v1204 = vpop.xlane.xlu0 %1203
    %1205 = vmax.xlane.f32.xlu0 %v309
    %v1206 = vpop.xlane.xlu0 %1205
    %v1207 = vmax.f32 %v1159, %v1176
    %v1208 = vmax.f32 %v1160, %v1178
    %v1209 = vmax.f32 %v1161, %v1180
    %v1210 = vmax.f32 %v1162, %v1182
    %v1211 = vmax.f32 %v1163, %v1184
    %v1212 = vmax.f32 %v1164, %v1186
    %v1213 = vmax.f32 %v1165, %v1188
    %v1214 = vmax.f32 %v1166, %v1190
    %v1215 = vmax.f32 %v1167, %v1192
    %v1216 = vmax.f32 %v1168, %v1194
    %v1217 = vmax.f32 %v1169, %v1196
    %v1218 = vmax.f32 %v1170, %v1198
    %v1219 = vmax.f32 %v1171, %v1200
    %v1220 = vmax.f32 %v1172, %v1202
    %v1221 = vmax.f32 %v1173, %v1204
    %v1222 = vmax.f32 %v1174, %v1206
    %v1223 = vsub.f32 %v1159, %v1207
    %v1224 = vsub.f32 %v1160, %v1208
    %v1225 = vsub.f32 %v1161, %v1209
    %v1226 = vsub.f32 %v1162, %v1210
    %v1227 = vsub.f32 %v1163, %v1211
    %v1228 = vsub.f32 %v1164, %v1212
    %v1229 = vsub.f32 %v1165, %v1213
    %v1230 = vsub.f32 %v1166, %v1214
    %v1231 = vsub.f32 %v1167, %v1215
    %v1232 = vsub.f32 %v1168, %v1216
    %v1233 = vsub.f32 %v1169, %v1217
    %v1234 = vsub.f32 %v1170, %v1218
    %v1235 = vsub.f32 %v1171, %v1219
    %v1236 = vsub.f32 %v1172, %v1220
    %v1237 = vsub.f32 %v1173, %v1221
    %v1238 = vsub.f32 %v1174, %v1222
    %v1239 = vmul.f32 %v1223, 1.442695
    %v1240 = vpow.pop %v1239
    %v1241 = vmul.f32 %v1224, 1.442695
    %v1242 = vpow.pop %v1241
    %v1243 = vmul.f32 %v1225, 1.442695
    %v1244 = vpow.pop %v1243
    %v1245 = vmul.f32 %v1226, 1.442695
    %v1246 = vpow.pop %v1245
    %v1247 = vmul.f32 %v1227, 1.442695
    %v1248 = vpow.pop %v1247
    %v1249 = vmul.f32 %v1228, 1.442695
    %v1250 = vpow.pop %v1249
    %v1251 = vmul.f32 %v1229, 1.442695
    %v1252 = vpow.pop %v1251
    %v1253 = vmul.f32 %v1230, 1.442695
    %v1254 = vpow.pop %v1253
    %v1255 = vmul.f32 %v1231, 1.442695
    %v1256 = vpow.pop %v1255
    %v1257 = vmul.f32 %v1232, 1.442695
    %v1258 = vpow.pop %v1257
    %v1259 = vmul.f32 %v1233, 1.442695
    %v1260 = vpow.pop %v1259
    %v1261 = vmul.f32 %v1234, 1.442695
    %v1262 = vpow.pop %v1261
    %v1263 = vmul.f32 %v1235, 1.442695
    %v1264 = vpow.pop %v1263
    %v1265 = vmul.f32 %v1236, 1.442695
    %v1266 = vpow.pop %v1265
    %v1267 = vmul.f32 %v1237, 1.442695
    %v1268 = vpow.pop %v1267
    %v1269 = vmul.f32 %v1238, 1.442695
    %v1270 = vpow.pop %v1269
    %1272 = vset.pattern.permute.xlu0 0
    %1273 = vperm.xlu0 %1272, %v1207
    %v1274 = vpop.permute.xlu0 %1273
    %1277 = vset.pattern.permute.xlu0 0
    %1278 = vperm.xlu0 %1277, %v1208
    %v1279 = vpop.permute.xlu0 %1278
    %1282 = vset.pattern.permute.xlu0 0
    %1283 = vperm.xlu0 %1282, %v1209
    %v1284 = vpop.permute.xlu0 %1283
    %1287 = vset.pattern.permute.xlu0 0
    %1288 = vperm.xlu0 %1287, %v1210
    %v1289 = vpop.permute.xlu0 %1288
    %1292 = vset.pattern.permute.xlu0 0
    %1293 = vperm.xlu0 %1292, %v1211
    %v1294 = vpop.permute.xlu0 %1293
    %1297 = vset.pattern.permute.xlu0 0
    %1298 = vperm.xlu0 %1297, %v1212
    %v1299 = vpop.permute.xlu0 %1298
    %1302 = vset.pattern.permute.xlu0 0
    %1303 = vperm.xlu0 %1302, %v1213
    %v1304 = vpop.permute.xlu0 %1303
    %1307 = vset.pattern.permute.xlu0 0
    %1308 = vperm.xlu0 %1307, %v1214
    %v1309 = vpop.permute.xlu0 %1308
    %1312 = vset.pattern.permute.xlu0 0
    %1313 = vperm.xlu0 %1312, %v1215
    %v1314 = vpop.permute.xlu0 %1313
    %1317 = vset.pattern.permute.xlu0 0
    %1318 = vperm.xlu0 %1317, %v1216
    %v1319 = vpop.permute.xlu0 %1318
    %1322 = vset.pattern.permute.xlu0 0
    %1323 = vperm.xlu0 %1322, %v1217
    %v1324 = vpop.permute.xlu0 %1323
    %1327 = vset.pattern.permute.xlu0 0
    %1328 = vperm.xlu0 %1327, %v1218
    %v1329 = vpop.permute.xlu0 %1328
    %1332 = vset.pattern.permute.xlu0 0
    %1333 = vperm.xlu0 %1332, %v1219
    %v1334 = vpop.permute.xlu0 %1333
    %1337 = vset.pattern.permute.xlu0 0
    %1338 = vperm.xlu0 %1337, %v1220
    %v1339 = vpop.permute.xlu0 %1338
    %1342 = vset.pattern.permute.xlu0 0
    %1343 = vperm.xlu0 %1342, %v1221
    %v1344 = vpop.permute.xlu0 %1343
    %1347 = vset.pattern.permute.xlu0 0
    %1348 = vperm.xlu0 %1347, %v1222
    %v1349 = vpop.permute.xlu0 %1348
    %v1351 = vsub.f32 %v250, %v1274
    %v1352 = vsub.f32 %v253, %v1279
    %v1353 = vsub.f32 %v258, %v1284
    %v1354 = vsub.f32 %v261, %v1289
    %v1355 = vsub.f32 %v266, %v1294
    %v1356 = vsub.f32 %v269, %v1299
    %v1357 = vsub.f32 %v274, %v1304
    %v1358 = vsub.f32 %v277, %v1309
    %v1359 = vsub.f32 %v282, %v1314
    %v1360 = vsub.f32 %v285, %v1319
    %v1361 = vsub.f32 %v290, %v1324
    %v1362 = vsub.f32 %v293, %v1329
    %v1363 = vsub.f32 %v298, %v1334
    %v1364 = vsub.f32 %v301, %v1339
    %v1365 = vsub.f32 %v306, %v1344
    %v1366 = vsub.f32 %v309, %v1349
    %v1367 = vmul.f32 %v1351, 1.442695
    %v1368 = vpow.pop %v1367
    %v1369 = vmul.f32 %v1352, 1.442695
    %v1370 = vpow.pop %v1369
    %v1371 = vmul.f32 %v1353, 1.442695
    %v1372 = vpow.pop %v1371
    %v1373 = vmul.f32 %v1354, 1.442695
    %v1374 = vpow.pop %v1373
    %v1375 = vmul.f32 %v1355, 1.442695
    %v1376 = vpow.pop %v1375
    %v1377 = vmul.f32 %v1356, 1.442695
    %v1378 = vpow.pop %v1377
    %v1379 = vmul.f32 %v1357, 1.442695
    %v1380 = vpow.pop %v1379
    %v1381 = vmul.f32 %v1358, 1.442695
    %v1382 = vpow.pop %v1381
    %v1383 = vmul.f32 %v1359, 1.442695
    %v1384 = vpow.pop %v1383
    %v1385 = vmul.f32 %v1360, 1.442695
    %v1386 = vpow.pop %v1385
    %v1387 = vmul.f32 %v1361, 1.442695
    %v1388 = vpow.pop %v1387
    %v1389 = vmul.f32 %v1362, 1.442695
    %v1390 = vpow.pop %v1389
    %v1391 = vmul.f32 %v1363, 1.442695
    %v1392 = vpow.pop %v1391
    %v1393 = vmul.f32 %v1364, 1.442695
    %v1394 = vpow.pop %v1393
    %v1395 = vmul.f32 %v1365, 1.442695
    %v1396 = vpow.pop %v1395
    %v1397 = vmul.f32 %v1366, 1.442695
    %v1398 = vpow.pop %v1397
    %v1399 = vld [vmem:[#allocation3] sm:$0xff]
    %v1400 = vld [vmem:[#allocation3 + $0x8] sm:$0xff]
    %v1401 = vld [vmem:[#allocation3 + $0x10] sm:$0xff]
    %v1402 = vld [vmem:[#allocation3 + $0x18] sm:$0xff]
    %v1403 = vld [vmem:[#allocation3 + $0x20] sm:$0xff]
    %v1404 = vld [vmem:[#allocation3 + $0x28] sm:$0xff]
    %v1405 = vld [vmem:[#allocation3 + $0x30] sm:$0xff]
    %v1406 = vld [vmem:[#allocation3 + $0x38] sm:$0xff]
    %v1407 = vld [vmem:[#allocation3 + $0x40] sm:$0xff]
    %v1408 = vld [vmem:[#allocation3 + $0x48] sm:$0xff]
    %v1409 = vld [vmem:[#allocation3 + $0x50] sm:$0xff]
    %v1410 = vld [vmem:[#allocation3 + $0x58] sm:$0xff]
    %v1411 = vld [vmem:[#allocation3 + $0x60] sm:$0xff]
    %v1412 = vld [vmem:[#allocation3 + $0x68] sm:$0xff]
    %v1413 = vld [vmem:[#allocation3 + $0x70] sm:$0xff]
    %v1414 = vld [vmem:[#allocation3 + $0x78] sm:$0xff]
    %v1415 = vmul.f32 %v1240, %v1399
    %v1416 = vmul.f32 %v1242, %v1400
    %v1417 = vmul.f32 %v1244, %v1401
    %v1418 = vmul.f32 %v1246, %v1402
    %v1419 = vmul.f32 %v1248, %v1403
    %v1420 = vmul.f32 %v1250, %v1404
    %v1421 = vmul.f32 %v1252, %v1405
    %v1422 = vmul.f32 %v1254, %v1406
    %v1423 = vmul.f32 %v1256, %v1407
    %v1424 = vmul.f32 %v1258, %v1408
    %v1425 = vmul.f32 %v1260, %v1409
    %v1426 = vmul.f32 %v1262, %v1410
    %v1427 = vmul.f32 %v1264, %v1411
    %v1428 = vmul.f32 %v1266, %v1412
    %v1429 = vmul.f32 %v1268, %v1413
    %v1430 = vmul.f32 %v1270, %v1414
    %1431 = vadd.xlane.f32.xlu0 %v1368
    %v1432 = vpop.xlane.xlu0 %1431
    %1433 = vadd.xlane.f32.xlu0 %v1370
    %v1434 = vpop.xlane.xlu0 %1433
    %1435 = vadd.xlane.f32.xlu0 %v1372
    %v1436 = vpop.xlane.xlu0 %1435
    %1437 = vadd.xlane.f32.xlu0 %v1374
    %v1438 = vpop.xlane.xlu0 %1437
    %1439 = vadd.xlane.f32.xlu0 %v1376
    %v1440 = vpop.xlane.xlu0 %1439
    %1441 = vadd.xlane.f32.xlu0 %v1378
    %v1442 = vpop.xlane.xlu0 %1441
    %1443 = vadd.xlane.f32.xlu0 %v1380
    %v1444 = vpop.xlane.xlu0 %1443
    %1445 = vadd.xlane.f32.xlu0 %v1382
    %v1446 = vpop.xlane.xlu0 %1445
    %1447 = vadd.xlane.f32.xlu0 %v1384
    %v1448 = vpop.xlane.xlu0 %1447
    %1449 = vadd.xlane.f32.xlu0 %v1386
    %v1450 = vpop.xlane.xlu0 %1449
    %1451 = vadd.xlane.f32.xlu0 %v1388
    %v1452 = vpop.xlane.xlu0 %1451
    %1453 = vadd.xlane.f32.xlu0 %v1390
    %v1454 = vpop.xlane.xlu0 %1453
    %1455 = vadd.xlane.f32.xlu0 %v1392
    %v1456 = vpop.xlane.xlu0 %1455
    %1457 = vadd.xlane.f32.xlu0 %v1394
    %v1458 = vpop.xlane.xlu0 %1457
    %1459 = vadd.xlane.f32.xlu0 %v1396
    %v1460 = vpop.xlane.xlu0 %1459
    %1461 = vadd.xlane.f32.xlu0 %v1398
    %v1462 = vpop.xlane.xlu0 %1461
    %v1463 = vadd.f32 %v1415, %v1432
    %v1464 = vadd.f32 %v1416, %v1434
    %v1465 = vadd.f32 %v1417, %v1436
    %v1466 = vadd.f32 %v1418, %v1438
    %v1467 = vadd.f32 %v1419, %v1440
    %v1468 = vadd.f32 %v1420, %v1442
    %v1469 = vadd.f32 %v1421, %v1444
    %v1470 = vadd.f32 %v1422, %v1446
    %v1471 = vadd.f32 %v1423, %v1448
    %v1472 = vadd.f32 %v1424, %v1450
    %v1473 = vadd.f32 %v1425, %v1452
    %v1474 = vadd.f32 %v1426, %v1454
    %v1475 = vadd.f32 %v1427, %v1456
    %v1476 = vadd.f32 %v1428, %v1458
    %v1477 = vadd.f32 %v1429, %v1460
    %v1478 = vadd.f32 %v1430, %v1462
    %vm1479 = vcmask 7168
    %1480 = vst.msk [vmem:[#allocation3] sm:$0xff] %vm1479, %v1463
    %1481 = vst.msk [vmem:[#allocation3 + $0x8] sm:$0xff] %vm1479, %v1464
    %1482 = vst.msk [vmem:[#allocation3 + $0x10] sm:$0xff] %vm1479, %v1465
    %1483 = vst.msk [vmem:[#allocation3 + $0x18] sm:$0xff] %vm1479, %v1466
    %1484 = vst.msk [vmem:[#allocation3 + $0x20] sm:$0xff] %vm1479, %v1467
    %1485 = vst.msk [vmem:[#allocation3 + $0x28] sm:$0xff] %vm1479, %v1468
    %1486 = vst.msk [vmem:[#allocation3 + $0x30] sm:$0xff] %vm1479, %v1469
    %1487 = vst.msk [vmem:[#allocation3 + $0x38] sm:$0xff] %vm1479, %v1470
    %1488 = vst.msk [vmem:[#allocation3 + $0x40] sm:$0xff] %vm1479, %v1471
    %1489 = vst.msk [vmem:[#allocation3 + $0x48] sm:$0xff] %vm1479, %v1472
    %1490 = vst.msk [vmem:[#allocation3 + $0x50] sm:$0xff] %vm1479, %v1473
    %1491 = vst.msk [vmem:[#allocation3 + $0x58] sm:$0xff] %vm1479, %v1474
    %1492 = vst.msk [vmem:[#allocation3 + $0x60] sm:$0xff] %vm1479, %v1475
    %1493 = vst.msk [vmem:[#allocation3 + $0x68] sm:$0xff] %vm1479, %v1476
    %1494 = vst.msk [vmem:[#allocation3 + $0x70] sm:$0xff] %vm1479, %v1477
    %1495 = vst.msk [vmem:[#allocation3 + $0x78] sm:$0xff] %vm1479, %v1478
    %1496 = vst.msk [vmem:[#allocation2] sm:$0xff] %vm1479, %v1207
    %1497 = vst.msk [vmem:[#allocation2 + $0x8] sm:$0xff] %vm1479, %v1208
    %1498 = vst.msk [vmem:[#allocation2 + $0x10] sm:$0xff] %vm1479, %v1209
    %1499 = vst.msk [vmem:[#allocation2 + $0x18] sm:$0xff] %vm1479, %v1210
    %1500 = vst.msk [vmem:[#allocation2 + $0x20] sm:$0xff] %vm1479, %v1211
    %1501 = vst.msk [vmem:[#allocation2 + $0x28] sm:$0xff] %vm1479, %v1212
    %1502 = vst.msk [vmem:[#allocation2 + $0x30] sm:$0xff] %vm1479, %v1213
    %1503 = vst.msk [vmem:[#allocation2 + $0x38] sm:$0xff] %vm1479, %v1214
    %1504 = vst.msk [vmem:[#allocation2 + $0x40] sm:$0xff] %vm1479, %v1215
    %1505 = vst.msk [vmem:[#allocation2 + $0x48] sm:$0xff] %vm1479, %v1216
    %1506 = vst.msk [vmem:[#allocation2 + $0x50] sm:$0xff] %vm1479, %v1217
    %1507 = vst.msk [vmem:[#allocation2 + $0x58] sm:$0xff] %vm1479, %v1218
    %1508 = vst.msk [vmem:[#allocation2 + $0x60] sm:$0xff] %vm1479, %v1219
    %1509 = vst.msk [vmem:[#allocation2 + $0x68] sm:$0xff] %vm1479, %v1220
    %1510 = vst.msk [vmem:[#allocation2 + $0x70] sm:$0xff] %vm1479, %v1221
    %1511 = vst.msk [vmem:[#allocation2 + $0x78] sm:$0xff] %vm1479, %v1222
    %v1512 = vld [vmem:[#allocation4] sm:$0xff]
    %v1513 = vld [vmem:[#allocation4 + $0x8] sm:$0xff]
    %v1514 = vld [vmem:[#allocation4 + $0x10] sm:$0xff]
    %v1515 = vld [vmem:[#allocation4 + $0x18] sm:$0xff]
    %v1516 = vld [vmem:[#allocation4 + $0x20] sm:$0xff]
    %v1517 = vld [vmem:[#allocation4 + $0x28] sm:$0xff]
    %v1518 = vld [vmem:[#allocation4 + $0x30] sm:$0xff]
    %v1519 = vld [vmem:[#allocation4 + $0x38] sm:$0xff]
    %v1520 = vld [vmem:[#allocation4 + $0x40] sm:$0xff]
    %v1521 = vld [vmem:[#allocation4 + $0x48] sm:$0xff]
    %v1522 = vld [vmem:[#allocation4 + $0x50] sm:$0xff]
    %v1523 = vld [vmem:[#allocation4 + $0x58] sm:$0xff]
    %v1524 = vld [vmem:[#allocation4 + $0x60] sm:$0xff]
    %v1525 = vld [vmem:[#allocation4 + $0x68] sm:$0xff]
    %v1526 = vld [vmem:[#allocation4 + $0x70] sm:$0xff]
    %v1527 = vld [vmem:[#allocation4 + $0x78] sm:$0xff]
    %v1528 = vsel %vm381, %v250, 0.0
    %v1529 = vsel %vm382, %v253, 0.0
    %v1530 = vsel %vm383, %v258, 0.0
    %v1531 = vsel %vm384, %v261, 0.0
    %v1532 = vsel %vm385, %v266, 0.0
    %v1533 = vsel %vm386, %v269, 0.0
    %v1534 = vsel %vm387, %v274, 0.0
    %v1535 = vsel %vm388, %v277, 0.0
    %v1536 = vsel %vm389, %v282, 0.0
    %v1537 = vsel %vm390, %v285, 0.0
    %v1538 = vsel %vm391, %v290, 0.0
    %v1539 = vsel %vm392, %v293, 0.0
    %v1540 = vsel %vm393, %v298, 0.0
    %v1541 = vsel %vm394, %v301, 0.0
    %v1542 = vsel %vm395, %v306, 0.0
    %v1543 = vsel %vm396, %v309, 0.0
    %1544 = vadd.xlane.f32.xlu0 %v1528
    %v1545 = vpop.xlane.xlu0 %1544
    %1546 = vadd.xlane.f32.xlu0 %v1529
    %v1547 = vpop.xlane.xlu0 %1546
    %1548 = vadd.xlane.f32.xlu0 %v1530
    %v1549 = vpop.xlane.xlu0 %1548
    %1550 = vadd.xlane.f32.xlu0 %v1531
    %v1551 = vpop.xlane.xlu0 %1550
    %1552 = vadd.xlane.f32.xlu0 %v1532
    %v1553 = vpop.xlane.xlu0 %1552
    %1554 = vadd.xlane.f32.xlu0 %v1533
    %v1555 = vpop.xlane.xlu0 %1554
    %1556 = vadd.xlane.f32.xlu0 %v1534
    %v1557 = vpop.xlane.xlu0 %1556
    %1558 = vadd.xlane.f32.xlu0 %v1535
    %v1559 = vpop.xlane.xlu0 %1558
    %1560 = vadd.xlane.f32.xlu0 %v1536
    %v1561 = vpop.xlane.xlu0 %1560
    %1562 = vadd.xlane.f32.xlu0 %v1537
    %v1563 = vpop.xlane.xlu0 %1562
    %1564 = vadd.xlane.f32.xlu0 %v1538
    %v1565 = vpop.xlane.xlu0 %1564
    %1566 = vadd.xlane.f32.xlu0 %v1539
    %v1567 = vpop.xlane.xlu0 %1566
    %1568 = vadd.xlane.f32.xlu0 %v1540
    %v1569 = vpop.xlane.xlu0 %1568
    %1570 = vadd.xlane.f32.xlu0 %v1541
    %v1571 = vpop.xlane.xlu0 %1570
    %1572 = vadd.xlane.f32.xlu0 %v1542
    %v1573 = vpop.xlane.xlu0 %1572
    %1574 = vadd.xlane.f32.xlu0 %v1543
    %v1575 = vpop.xlane.xlu0 %1574
    %v1576 = vadd.f32 %v1512, %v1545
    %v1577 = vadd.f32 %v1513, %v1547
    %v1578 = vadd.f32 %v1514, %v1549
    %v1579 = vadd.f32 %v1515, %v1551
    %v1580 = vadd.f32 %v1516, %v1553
    %v1581 = vadd.f32 %v1517, %v1555
    %v1582 = vadd.f32 %v1518, %v1557
    %v1583 = vadd.f32 %v1519, %v1559
    %v1584 = vadd.f32 %v1520, %v1561
    %v1585 = vadd.f32 %v1521, %v1563
    %v1586 = vadd.f32 %v1522, %v1565
    %v1587 = vadd.f32 %v1523, %v1567
    %v1588 = vadd.f32 %v1524, %v1569
    %v1589 = vadd.f32 %v1525, %v1571
    %v1590 = vadd.f32 %v1526, %v1573
    %v1591 = vadd.f32 %v1527, %v1575
    %1592 = vst.msk [vmem:[#allocation4] sm:$0xff] %vm1479, %v1576
    %1593 = vst.msk [vmem:[#allocation4 + $0x8] sm:$0xff] %vm1479, %v1577
    %1594 = vst.msk [vmem:[#allocation4 + $0x10] sm:$0xff] %vm1479, %v1578
    %1595 = vst.msk [vmem:[#allocation4 + $0x18] sm:$0xff] %vm1479, %v1579
    %1596 = vst.msk [vmem:[#allocation4 + $0x20] sm:$0xff] %vm1479, %v1580
    %1597 = vst.msk [vmem:[#allocation4 + $0x28] sm:$0xff] %vm1479, %v1581
    %1598 = vst.msk [vmem:[#allocation4 + $0x30] sm:$0xff] %vm1479, %v1582
    %1599 = vst.msk [vmem:[#allocation4 + $0x38] sm:$0xff] %vm1479, %v1583
    %1600 = vst.msk [vmem:[#allocation4 + $0x40] sm:$0xff] %vm1479, %v1584
    %1601 = vst.msk [vmem:[#allocation4 + $0x48] sm:$0xff] %vm1479, %v1585
    %1602 = vst.msk [vmem:[#allocation4 + $0x50] sm:$0xff] %vm1479, %v1586
    %1603 = vst.msk [vmem:[#allocation4 + $0x58] sm:$0xff] %vm1479, %v1587
    %1604 = vst.msk [vmem:[#allocation4 + $0x60] sm:$0xff] %vm1479, %v1588
    %1605 = vst.msk [vmem:[#allocation4 + $0x68] sm:$0xff] %vm1479, %v1589
    %1606 = vst.msk [vmem:[#allocation4 + $0x70] sm:$0xff] %vm1479, %v1590
    %1607 = vst.msk [vmem:[#allocation4 + $0x78] sm:$0xff] %vm1479, %v1591
    %v1608 = vld [vmem:[#allocation5] sm:$0xff]
    %v1609 = vld [vmem:[#allocation5 + $0x8] sm:$0xff]
    %v1610 = vld [vmem:[#allocation5 + $0x10] sm:$0xff]
    %v1611 = vld [vmem:[#allocation5 + $0x18] sm:$0xff]
    %v1612 = vld [vmem:[#allocation5 + $0x20] sm:$0xff]
    %v1613 = vld [vmem:[#allocation5 + $0x28] sm:$0xff]
    %v1614 = vld [vmem:[#allocation5 + $0x30] sm:$0xff]
    %v1615 = vld [vmem:[#allocation5 + $0x38] sm:$0xff]
    %v1616 = vld [vmem:[#allocation5 + $0x40] sm:$0xff]
    %v1617 = vld [vmem:[#allocation5 + $0x48] sm:$0xff]
    %v1618 = vld [vmem:[#allocation5 + $0x50] sm:$0xff]
    %v1619 = vld [vmem:[#allocation5 + $0x58] sm:$0xff]
    %v1620 = vld [vmem:[#allocation5 + $0x60] sm:$0xff]
    %v1621 = vld [vmem:[#allocation5 + $0x68] sm:$0xff]
    %v1622 = vld [vmem:[#allocation5 + $0x70] sm:$0xff]
    %v1623 = vld [vmem:[#allocation5 + $0x78] sm:$0xff]
    %v1624 = vsel %vm381, 1, 0
    %v1625 = vsel %vm382, 1, 0
    %v1626 = vsel %vm383, 1, 0
    %v1627 = vsel %vm384, 1, 0
    %v1628 = vsel %vm385, 1, 0
    %v1629 = vsel %vm386, 1, 0
    %v1630 = vsel %vm387, 1, 0
    %v1631 = vsel %vm388, 1, 0
    %v1632 = vsel %vm389, 1, 0
    %v1633 = vsel %vm390, 1, 0
    %v1634 = vsel %vm391, 1, 0
    %v1635 = vsel %vm392, 1, 0
    %v1636 = vsel %vm393, 1, 0
    %v1637 = vsel %vm394, 1, 0
    %v1638 = vsel %vm395, 1, 0
    %v1639 = vsel %vm396, 1, 0
    %v1640 = vcvt.s32.f32 %v1624
    %v1641 = vcvt.s32.f32 %v1625
    %v1642 = vcvt.s32.f32 %v1626
    %v1643 = vcvt.s32.f32 %v1627
    %v1644 = vcvt.s32.f32 %v1628
    %v1645 = vcvt.s32.f32 %v1629
    %v1646 = vcvt.s32.f32 %v1630
    %v1647 = vcvt.s32.f32 %v1631
    %v1648 = vcvt.s32.f32 %v1632
    %v1649 = vcvt.s32.f32 %v1633
    %v1650 = vcvt.s32.f32 %v1634
    %v1651 = vcvt.s32.f32 %v1635
    %v1652 = vcvt.s32.f32 %v1636
    %v1653 = vcvt.s32.f32 %v1637
    %v1654 = vcvt.s32.f32 %v1638
    %v1655 = vcvt.s32.f32 %v1639
    %1656 = vadd.xlane.f32.xlu0 %v1640
    %v1657 = vpop.xlane.xlu0 %1656
    %1658 = vadd.xlane.f32.xlu0 %v1641
    %v1659 = vpop.xlane.xlu0 %1658
    %1660 = vadd.xlane.f32.xlu0 %v1642
    %v1661 = vpop.xlane.xlu0 %1660
    %1662 = vadd.xlane.f32.xlu0 %v1643
    %v1663 = vpop.xlane.xlu0 %1662
    %1664 = vadd.xlane.f32.xlu0 %v1644
    %v1665 = vpop.xlane.xlu0 %1664
    %1666 = vadd.xlane.f32.xlu0 %v1645
    %v1667 = vpop.xlane.xlu0 %1666
    %1668 = vadd.xlane.f32.xlu0 %v1646
    %v1669 = vpop.xlane.xlu0 %1668
    %1670 = vadd.xlane.f32.xlu0 %v1647
    %v1671 = vpop.xlane.xlu0 %1670
    %1672 = vadd.xlane.f32.xlu0 %v1648
    %v1673 = vpop.xlane.xlu0 %1672
    %1674 = vadd.xlane.f32.xlu0 %v1649
    %v1675 = vpop.xlane.xlu0 %1674
    %1676 = vadd.xlane.f32.xlu0 %v1650
    %v1677 = vpop.xlane.xlu0 %1676
    %1678 = vadd.xlane.f32.xlu0 %v1651
    %v1679 = vpop.xlane.xlu0 %1678
    %1680 = vadd.xlane.f32.xlu0 %v1652
    %v1681 = vpop.xlane.xlu0 %1680
    %1682 = vadd.xlane.f32.xlu0 %v1653
    %v1683 = vpop.xlane.xlu0 %1682
    %1684 = vadd.xlane.f32.xlu0 %v1654
    %v1685 = vpop.xlane.xlu0 %1684
    %1686 = vadd.xlane.f32.xlu0 %v1655
    %v1687 = vpop.xlane.xlu0 %1686
    %v1688 = vadd.f32 %v1608, %v1657
    %v1689 = vadd.f32 %v1609, %v1659
    %v1690 = vadd.f32 %v1610, %v1661
    %v1691 = vadd.f32 %v1611, %v1663
    %v1692 = vadd.f32 %v1612, %v1665
    %v1693 = vadd.f32 %v1613, %v1667
    %v1694 = vadd.f32 %v1614, %v1669
    %v1695 = vadd.f32 %v1615, %v1671
    %v1696 = vadd.f32 %v1616, %v1673
    %v1697 = vadd.f32 %v1617, %v1675
    %v1698 = vadd.f32 %v1618, %v1677
    %v1699 = vadd.f32 %v1619, %v1679
    %v1700 = vadd.f32 %v1620, %v1681
    %v1701 = vadd.f32 %v1621, %v1683
    %v1702 = vadd.f32 %v1622, %v1685
    %v1703 = vadd.f32 %v1623, %v1687
    %1704 = vst.msk [vmem:[#allocation5] sm:$0xff] %vm1479, %v1688
    %1705 = vst.msk [vmem:[#allocation5 + $0x8] sm:$0xff] %vm1479, %v1689
    %1706 = vst.msk [vmem:[#allocation5 + $0x10] sm:$0xff] %vm1479, %v1690
    %1707 = vst.msk [vmem:[#allocation5 + $0x18] sm:$0xff] %vm1479, %v1691
    %1708 = vst.msk [vmem:[#allocation5 + $0x20] sm:$0xff] %vm1479, %v1692
    %1709 = vst.msk [vmem:[#allocation5 + $0x28] sm:$0xff] %vm1479, %v1693
    %1710 = vst.msk [vmem:[#allocation5 + $0x30] sm:$0xff] %vm1479, %v1694
    %1711 = vst.msk [vmem:[#allocation5 + $0x38] sm:$0xff] %vm1479, %v1695
    %1712 = vst.msk [vmem:[#allocation5 + $0x40] sm:$0xff] %vm1479, %v1696
    %1713 = vst.msk [vmem:[#allocation5 + $0x48] sm:$0xff] %vm1479, %v1697
    %1714 = vst.msk [vmem:[#allocation5 + $0x50] sm:$0xff] %vm1479, %v1698
    %1715 = vst.msk [vmem:[#allocation5 + $0x58] sm:$0xff] %vm1479, %v1699
    %1716 = vst.msk [vmem:[#allocation5 + $0x60] sm:$0xff] %vm1479, %v1700
    %1717 = vst.msk [vmem:[#allocation5 + $0x68] sm:$0xff] %vm1479, %v1701
    %1718 = vst.msk [vmem:[#allocation5 + $0x70] sm:$0xff] %vm1479, %v1702
    %1719 = vst.msk [vmem:[#allocation5 + $0x78] sm:$0xff] %vm1479, %v1703
  $region29: #{tpu_custom_call.1} parent=0 // pred_fallthru
    _
  // Predicated region
  $region30: #{tpu_custom_call.1} parent=0 // pred_check
    %p1720 = pneg %p18
  $region31: #{tpu_custom_call.1} parent=0 // pred_check_branch
    %1722 = sbr.rel (%p1720) target = $region33
  $region32: #{tpu_custom_call.1} parent=0 // pred_region
    %v1723 = vld [vmem:[#allocation4] sm:$0xff]
    %v1724 = vld [vmem:[#allocation4 + $0x8] sm:$0xff]
    %v1725 = vld [vmem:[#allocation4 + $0x10] sm:$0xff]
    %v1726 = vld [vmem:[#allocation4 + $0x18] sm:$0xff]
    %v1727 = vld [vmem:[#allocation4 + $0x20] sm:$0xff]
    %v1728 = vld [vmem:[#allocation4 + $0x28] sm:$0xff]
    %v1729 = vld [vmem:[#allocation4 + $0x30] sm:$0xff]
    %v1730 = vld [vmem:[#allocation4 + $0x38] sm:$0xff]
    %v1731 = vld [vmem:[#allocation4 + $0x40] sm:$0xff]
    %v1732 = vld [vmem:[#allocation4 + $0x48] sm:$0xff]
    %v1733 = vld [vmem:[#allocation4 + $0x50] sm:$0xff]
    %v1734 = vld [vmem:[#allocation4 + $0x58] sm:$0xff]
    %v1735 = vld [vmem:[#allocation4 + $0x60] sm:$0xff]
    %v1736 = vld [vmem:[#allocation4 + $0x68] sm:$0xff]
    %v1737 = vld [vmem:[#allocation4 + $0x70] sm:$0xff]
    %v1738 = vld [vmem:[#allocation4 + $0x78] sm:$0xff]
    %v1739 = vld [vmem:[#allocation5] sm:$0xff]
    %v1740 = vld [vmem:[#allocation5 + $0x8] sm:$0xff]
    %v1741 = vld [vmem:[#allocation5 + $0x10] sm:$0xff]
    %v1742 = vld [vmem:[#allocation5 + $0x18] sm:$0xff]
    %v1743 = vld [vmem:[#allocation5 + $0x20] sm:$0xff]
    %v1744 = vld [vmem:[#allocation5 + $0x28] sm:$0xff]
    %v1745 = vld [vmem:[#allocation5 + $0x30] sm:$0xff]
    %v1746 = vld [vmem:[#allocation5 + $0x38] sm:$0xff]
    %v1747 = vld [vmem:[#allocation5 + $0x40] sm:$0xff]
    %v1748 = vld [vmem:[#allocation5 + $0x48] sm:$0xff]
    %v1749 = vld [vmem:[#allocation5 + $0x50] sm:$0xff]
    %v1750 = vld [vmem:[#allocation5 + $0x58] sm:$0xff]
    %v1751 = vld [vmem:[#allocation5 + $0x60] sm:$0xff]
    %v1752 = vld [vmem:[#allocation5 + $0x68] sm:$0xff]
    %v1753 = vld [vmem:[#allocation5 + $0x70] sm:$0xff]
    %v1754 = vld [vmem:[#allocation5 + $0x78] sm:$0xff]
    %v1755 = vrcp.pop %v1739
    %v1756 = vmul.f32 %v1723, %v1755
    %v1757 = vrcp.pop %v1740
    %v1758 = vmul.f32 %v1724, %v1757
    %v1759 = vrcp.pop %v1741
    %v1760 = vmul.f32 %v1725, %v1759
    %v1761 = vrcp.pop %v1742
    %v1762 = vmul.f32 %v1726, %v1761
    %v1763 = vrcp.pop %v1743
    %v1764 = vmul.f32 %v1727, %v1763
    %v1765 = vrcp.pop %v1744
    %v1766 = vmul.f32 %v1728, %v1765
    %v1767 = vrcp.pop %v1745
    %v1768 = vmul.f32 %v1729, %v1767
    %v1769 = vrcp.pop %v1746
    %v1770 = vmul.f32 %v1730, %v1769
    %v1771 = vrcp.pop %v1747
    %v1772 = vmul.f32 %v1731, %v1771
    %v1773 = vrcp.pop %v1748
    %v1774 = vmul.f32 %v1732, %v1773
    %v1775 = vrcp.pop %v1749
    %v1776 = vmul.f32 %v1733, %v1775
    %v1777 = vrcp.pop %v1750
    %v1778 = vmul.f32 %v1734, %v1777
    %v1779 = vrcp.pop %v1751
    %v1780 = vmul.f32 %v1735, %v1779
    %v1781 = vrcp.pop %v1752
    %v1782 = vmul.f32 %v1736, %v1781
    %v1783 = vrcp.pop %v1753
    %v1784 = vmul.f32 %v1737, %v1783
    %v1785 = vrcp.pop %v1754
    %v1786 = vmul.f32 %v1738, %v1785
    %v1787 = vld [vmem:[#allocation2] sm:$0xff]
    %v1788 = vld [vmem:[#allocation2 + $0x8] sm:$0xff]
    %v1789 = vld [vmem:[#allocation2 + $0x10] sm:$0xff]
    %v1790 = vld [vmem:[#allocation2 + $0x18] sm:$0xff]
    %v1791 = vld [vmem:[#allocation2 + $0x20] sm:$0xff]
    %v1792 = vld [vmem:[#allocation2 + $0x28] sm:$0xff]
    %v1793 = vld [vmem:[#allocation2 + $0x30] sm:$0xff]
    %v1794 = vld [vmem:[#allocation2 + $0x38] sm:$0xff]
    %v1795 = vld [vmem:[#allocation2 + $0x40] sm:$0xff]
    %v1796 = vld [vmem:[#allocation2 + $0x48] sm:$0xff]
    %v1797 = vld [vmem:[#allocation2 + $0x50] sm:$0xff]
    %v1798 = vld [vmem:[#allocation2 + $0x58] sm:$0xff]
    %v1799 = vld [vmem:[#allocation2 + $0x60] sm:$0xff]
    %v1800 = vld [vmem:[#allocation2 + $0x68] sm:$0xff]
    %v1801 = vld [vmem:[#allocation2 + $0x70] sm:$0xff]
    %v1802 = vld [vmem:[#allocation2 + $0x78] sm:$0xff]
    %v1803 = vsub.f32 %v1756, %v1787
    %v1804 = vsub.f32 %v1758, %v1788
    %v1805 = vsub.f32 %v1760, %v1789
    %v1806 = vsub.f32 %v1762, %v1790
    %v1807 = vsub.f32 %v1764, %v1791
    %v1808 = vsub.f32 %v1766, %v1792
    %v1809 = vsub.f32 %v1768, %v1793
    %v1810 = vsub.f32 %v1770, %v1794
    %v1811 = vsub.f32 %v1772, %v1795
    %v1812 = vsub.f32 %v1774, %v1796
    %v1813 = vsub.f32 %v1776, %v1797
    %v1814 = vsub.f32 %v1778, %v1798
    %v1815 = vsub.f32 %v1780, %v1799
    %v1816 = vsub.f32 %v1782, %v1800
    %v1817 = vsub.f32 %v1784, %v1801
    %v1818 = vsub.f32 %v1786, %v1802
    %v1819 = vld [vmem:[#allocation3] sm:$0xff]
    %v1820 = vld [vmem:[#allocation3 + $0x8] sm:$0xff]
    %v1821 = vld [vmem:[#allocation3 + $0x10] sm:$0xff]
    %v1822 = vld [vmem:[#allocation3 + $0x18] sm:$0xff]
    %v1823 = vld [vmem:[#allocation3 + $0x20] sm:$0xff]
    %v1824 = vld [vmem:[#allocation3 + $0x28] sm:$0xff]
    %v1825 = vld [vmem:[#allocation3 + $0x30] sm:$0xff]
    %v1826 = vld [vmem:[#allocation3 + $0x38] sm:$0xff]
    %v1827 = vld [vmem:[#allocation3 + $0x40] sm:$0xff]
    %v1828 = vld [vmem:[#allocation3 + $0x48] sm:$0xff]
    %v1829 = vld [vmem:[#allocation3 + $0x50] sm:$0xff]
    %v1830 = vld [vmem:[#allocation3 + $0x58] sm:$0xff]
    %v1831 = vld [vmem:[#allocation3 + $0x60] sm:$0xff]
    %v1832 = vld [vmem:[#allocation3 + $0x68] sm:$0xff]
    %v1833 = vld [vmem:[#allocation3 + $0x70] sm:$0xff]
    %v1834 = vld [vmem:[#allocation3 + $0x78] sm:$0xff]
    %v1835 = vlog2.pop %v1819
    %v1836 = vmul.f32 %v1835, 0.6931472
    %v1837 = vlog2.pop %v1820
    %v1838 = vmul.f32 %v1837, 0.6931472
    %v1839 = vlog2.pop %v1821
    %v1840 = vmul.f32 %v1839, 0.6931472
    %v1841 = vlog2.pop %v1822
    %v1842 = vmul.f32 %v1841, 0.6931472
    %v1843 = vlog2.pop %v1823
    %v1844 = vmul.f32 %v1843, 0.6931472
    %v1845 = vlog2.pop %v1824
    %v1846 = vmul.f32 %v1845, 0.6931472
    %v1847 = vlog2.pop %v1825
    %v1848 = vmul.f32 %v1847, 0.6931472
    %v1849 = vlog2.pop %v1826
    %v1850 = vmul.f32 %v1849, 0.6931472
    %v1851 = vlog2.pop %v1827
    %v1852 = vmul.f32 %v1851, 0.6931472
    %v1853 = vlog2.pop %v1828
    %v1854 = vmul.f32 %v1853, 0.6931472
    %v1855 = vlog2.pop %v1829
    %v1856 = vmul.f32 %v1855, 0.6931472
    %v1857 = vlog2.pop %v1830
    %v1858 = vmul.f32 %v1857, 0.6931472
    %v1859 = vlog2.pop %v1831
    %v1860 = vmul.f32 %v1859, 0.6931472
    %v1861 = vlog2.pop %v1832
    %v1862 = vmul.f32 %v1861, 0.6931472
    %v1863 = vlog2.pop %v1833
    %v1864 = vmul.f32 %v1863, 0.6931472
    %v1865 = vlog2.pop %v1834
    %v1866 = vmul.f32 %v1865, 0.6931472
    %v1867 = vsub.f32 %v1803, %v1836
    %v1868 = vsub.f32 %v1804, %v1838
    %v1869 = vsub.f32 %v1805, %v1840
    %v1870 = vsub.f32 %v1806, %v1842
    %v1871 = vsub.f32 %v1807, %v1844
    %v1872 = vsub.f32 %v1808, %v1846
    %v1873 = vsub.f32 %v1809, %v1848
    %v1874 = vsub.f32 %v1810, %v1850
    %v1875 = vsub.f32 %v1811, %v1852
    %v1876 = vsub.f32 %v1812, %v1854
    %v1877 = vsub.f32 %v1813, %v1856
    %v1878 = vsub.f32 %v1814, %v1858
    %v1879 = vsub.f32 %v1815, %v1860
    %v1880 = vsub.f32 %v1816, %v1862
    %v1881 = vsub.f32 %v1817, %v1864
    %v1882 = vsub.f32 %v1818, %v1866
    %v1883 = vlaneseq
    %v1884 = vshrl.u32 %v1883, 7
    %v1885 = vadd.s32 %v1884, 8
    %v1886 = vadd.s32 %v1884, 16
    %v1887 = vadd.s32 %v1884, 24
    %v1888 = vadd.s32 %v1884, 32
    %v1889 = vadd.s32 %v1884, 40
    %v1890 = vadd.s32 %v1884, 48
    %v1891 = vadd.s32 %v1884, 56
    %v1892 = vadd.s32 %v1884, 64
    %v1893 = vadd.s32 %v1884, 72
    %v1894 = vadd.s32 %v1884, 80
    %v1895 = vadd.s32 %v1884, 88
    %v1896 = vadd.s32 %v1884, 96
    %v1897 = vadd.s32 %v1884, 104
    %v1898 = vadd.s32 %v1884, 112
    %v1899 = vadd.s32 %v1884, 120
    %v1900 = vstv %s397
    %v1901 = vadd.s32 %v1900, %v1884
    %v1902 = vadd.s32 %v1900, %v1885
    %v1903 = vadd.s32 %v1900, %v1886
    %v1904 = vadd.s32 %v1900, %v1887
    %v1905 = vadd.s32 %v1900, %v1888
    %v1906 = vadd.s32 %v1900, %v1889
    %v1907 = vadd.s32 %v1900, %v1890
    %v1908 = vadd.s32 %v1900, %v1891
    %v1909 = vadd.s32 %v1900, %v1892
    %v1910 = vadd.s32 %v1900, %v1893
    %v1911 = vadd.s32 %v1900, %v1894
    %v1912 = vadd.s32 %v1900, %v1895
    %v1913 = vadd.s32 %v1900, %v1896
    %v1914 = vadd.s32 %v1900, %v1897
    %v1915 = vadd.s32 %v1900, %v1898
    %v1916 = vadd.s32 %v1900, %v1899
    %vm1917 = vcmp.lt.s32.totalorder %v1901, 16
    %vm1918 = vcmp.lt.s32.totalorder %v1902, 16
    %vm1919 = vcmp.lt.s32.totalorder %v1903, 16
    %vm1920 = vcmp.lt.s32.totalorder %v1904, 16
    %vm1921 = vcmp.lt.s32.totalorder %v1905, 16
    %vm1922 = vcmp.lt.s32.totalorder %v1906, 16
    %vm1923 = vcmp.lt.s32.totalorder %v1907, 16
    %vm1924 = vcmp.lt.s32.totalorder %v1908, 16
    %vm1925 = vcmp.lt.s32.totalorder %v1909, 16
    %vm1926 = vcmp.lt.s32.totalorder %v1910, 16
    %vm1927 = vcmp.lt.s32.totalorder %v1911, 16
    %vm1928 = vcmp.lt.s32.totalorder %v1912, 16
    %vm1929 = vcmp.lt.s32.totalorder %v1913, 16
    %vm1930 = vcmp.lt.s32.totalorder %v1914, 16
    %vm1931 = vcmp.lt.s32.totalorder %v1915, 16
    %vm1932 = vcmp.lt.s32.totalorder %v1916, 16
    %v1933 = vmul.f32 %v1867, -1.0
    %v1934 = vmul.f32 %v1868, -1.0
    %v1935 = vmul.f32 %v1869, -1.0
    %v1936 = vmul.f32 %v1870, -1.0
    %v1937 = vmul.f32 %v1871, -1.0
    %v1938 = vmul.f32 %v1872, -1.0
    %v1939 = vmul.f32 %v1873, -1.0
    %v1940 = vmul.f32 %v1874, -1.0
    %v1941 = vmul.f32 %v1875, -1.0
    %v1942 = vmul.f32 %v1876, -1.0
    %v1943 = vmul.f32 %v1877, -1.0
    %v1944 = vmul.f32 %v1878, -1.0
    %v1945 = vmul.f32 %v1879, -1.0
    %v1946 = vmul.f32 %v1880, -1.0
    %v1947 = vmul.f32 %v1881, -1.0
    %v1948 = vmul.f32 %v1882, -1.0
    %v1949 = vsel %vm1917, %v1933, 0.0
    %v1950 = vsel %vm1918, %v1934, 0.0
    %v1951 = vsel %vm1919, %v1935, 0.0
    %v1952 = vsel %vm1920, %v1936, 0.0
    %v1953 = vsel %vm1921, %v1937, 0.0
    %v1954 = vsel %vm1922, %v1938, 0.0
    %v1955 = vsel %vm1923, %v1939, 0.0
    %v1956 = vsel %vm1924, %v1940, 0.0
    %v1957 = vsel %vm1925, %v1941, 0.0
    %v1958 = vsel %vm1926, %v1942, 0.0
    %v1959 = vsel %vm1927, %v1943, 0.0
    %v1960 = vsel %vm1928, %v1944, 0.0
    %v1961 = vsel %vm1929, %v1945, 0.0
    %v1962 = vsel %vm1930, %v1946, 0.0
    %v1963 = vsel %vm1931, %v1947, 0.0
    %v1964 = vsel %vm1932, %v1948, 0.0
    %vm1965 = vcmask 7168
    %1966 = vst.msk [vmem:[%s4] sm:$0xff] %vm1965, %v1949
    %1967 = vst.msk [vmem:[%s4 + $0x8] sm:$0xff] %vm1965, %v1950
    %1968 = vst.msk [vmem:[%s4 + $0x10] sm:$0xff] %vm1965, %v1951
    %1969 = vst.msk [vmem:[%s4 + $0x18] sm:$0xff] %vm1965, %v1952
    %1970 = vst.msk [vmem:[%s4 + $0x20] sm:$0xff] %vm1965, %v1953
    %1971 = vst.msk [vmem:[%s4 + $0x28] sm:$0xff] %vm1965, %v1954
    %1972 = vst.msk [vmem:[%s4 + $0x30] sm:$0xff] %vm1965, %v1955
    %1973 = vst.msk [vmem:[%s4 + $0x38] sm:$0xff] %vm1965, %v1956
    %1974 = vst.msk [vmem:[%s4 + $0x40] sm:$0xff] %vm1965, %v1957
    %1975 = vst.msk [vmem:[%s4 + $0x48] sm:$0xff] %vm1965, %v1958
    %1976 = vst.msk [vmem:[%s4 + $0x50] sm:$0xff] %vm1965, %v1959
    %1977 = vst.msk [vmem:[%s4 + $0x58] sm:$0xff] %vm1965, %v1960
    %1978 = vst.msk [vmem:[%s4 + $0x60] sm:$0xff] %vm1965, %v1961
    %1979 = vst.msk [vmem:[%s4 + $0x68] sm:$0xff] %vm1965, %v1962
    %1980 = vst.msk [vmem:[%s4 + $0x70] sm:$0xff] %vm1965, %v1963
    %1981 = vst.msk [vmem:[%s4 + $0x78] sm:$0xff] %vm1965, %v1964
  $region33: #{tpu_custom_call.1} parent=0 // pred_fallthru
    _
  // Predicated region
  $region34: #{tpu_custom_call.1} parent=0 // pred_check
    _
  $region35: #{tpu_custom_call.1} parent=0 // pred_check_branch
    %1983 = sbr.rel (0) target = $region37
  $region36: #{tpu_custom_call.1} parent=0 // pred_region
    _
  $region37: #{tpu_custom_call.1} parent=0 // pred_fallthru
    _
  // Predicated region
  $region38: #{tpu_custom_call.1} parent=0 // pred_check
    _
  $region39: #{tpu_custom_call.1} parent=0 // pred_check_branch
    %1985 = sbr.rel (0) target = $region41
  $region40: #{tpu_custom_call.1} parent=0 // pred_region
    _
  $region41: #{tpu_custom_call.1} parent=0 // pred_fallthru
    _

</llo_original>
